<compile_context>
chip_gen: v7x
topology: tpu7x:2x2x1
jax: 0.10.0
libtpu: 0.0.40
codegen_flags: <defaults>
</compile_context>

<pallas_src>
import jax
import jax.numpy as jnp
from jax import lax
from jax.experimental import pallas as pl
from jax.experimental.pallas import tpu as pltpu


def _round_up(x, m):
    return (x + m - 1) // m * m


def _vmem_capacity_bytes():
    try:
        return int(pltpu.get_tpu_info().vmem_capacity_bytes)
    except Exception:
        return 64 << 20   # conservative: v7x per-TensorCore VMEM


def _choose_tiling(N, K, w_itemsize, vmem_cap):
    """Pick (tn, n_pad) for the output / weight-row (N) axis."""
    n128 = _round_up(N, 128)
    if n128 <= 128:
        # Single tile, no padding, no output slice: full-array blocks are
        # exempt from the (8,128) divisibility rule.
        return N, N
    # Cap 1: double-buffered weight tile well under ~40% of VMEM.
    max_tn_vmem = (int(0.4 * vmem_cap) // (2 * K * w_itemsize)) // 128 * 128
    # Cap 2: at least 2 tiles so the "parallel" axis shards over v7x's 2 TCs.
    max_tn_split = (n128 // 2) // 128 * 128
    tn_cap = max(128, min(max_tn_vmem, max_tn_split))

    def score(tn):
        n_pad = _round_up(N, tn)
        waste = (n_pad - N) / n_pad
        tile_bytes = tn * K * w_itemsize
        n_tiles = n_pad // tn
        # Prefer: <5% dead rows, >=2 MiB DMAs, even tile count (TC balance),
        # then the largest tile, then the smallest waste.
        return (waste > 0.05, tile_bytes < (2 << 20), n_tiles % 2, -tn, waste)

    tn = min(range(128, tn_cap + 1, 128), key=score)
    return tn, _round_up(N, tn)


def _make_texture_kernel(compute_dtype):
    def kernel(feat_ref, w_ref, b_ref, out_ref):
        """out[:, tile] = feat @ W[tile, :].T + b[tile]

        feat_ref: (B, K)   w_ref: (TN, K)   b_ref: (1, TN)   out_ref: (B, TN)
        """
        a = feat_ref[...].astype(compute_dtype)
        w = w_ref[...].astype(compute_dtype)   # fp8 weights upcast in-vreg
        acc = lax.dot_general(
            a, w,
            dimension_numbers=(((1,), (1,)), ((), ())),   # contract K with K
            preferred_element_type=jnp.float32,
        )
        out_ref[...] = (acc + b_ref[...]).astype(out_ref.dtype)
    return kernel


def make_texture_predictor_2d(weight, bias, num_verts, *,
                              weight_dtype=jnp.bfloat16):
    """Prepare (pad + cast) the conv1x1 params ONCE; return forward(feat).

    weight: (num_verts*3, 4096) f32, native PyTorch Conv2d (N, K) layout
    bias:   (num_verts*3,) f32
    weight_dtype: jnp.bfloat16 (default stream dtype), jnp.float32, or
                  jnp.float8_e4m3fn (v7x weight-stream option).
    """
    N = num_verts * 3
    K = weight.shape[1]
    assert weight.shape == (N, K), weight.shape
    assert bias.shape == (N,), bias.shape

    w_item = jnp.dtype(weight_dtype).itemsize
    tn, n_pad = _choose_tiling(N, K, w_item, _vmem_capacity_bytes())
    n_tiles = n_pad // tn

    if n_pad != N:   # zero rows + zero bias entries, sliced off after the call
        weight = jnp.pad(weight, ((0, n_pad - N), (0, 0)))
        bias = jnp.pad(bias, (0, n_pad - N))
    w_prep = jnp.asarray(weight, dtype=weight_dtype)            # cast once
    b_prep = jnp.asarray(bias, dtype=jnp.float32).reshape(1, n_pad)

    compute_dtype = jnp.float32 if weight_dtype == jnp.float32 else jnp.bfloat16
    f_item = jnp.dtype(compute_dtype).itemsize
    kernel = _make_texture_kernel(compute_dtype)

    def forward(feat):
        # Note: for B >= ~64 a blocked-B "parallel" grid axis should be added
        # so the resident feat block stays small; at B=2 the kernel is purely
        # weight-bandwidth bound and a single feat block is optimal.
        B = feat.shape[0]
        feat2d = feat.reshape(B, K).astype(compute_dtype)       # tiny (B*K)

        vmem_bytes = int(2 * tn * K * w_item        # streamed weight tiles
                         + 2 * B * K * f_item       # resident feat block
                         + 2 * B * tn * 4           # output block
                         + 2 * tn * 4               # bias block
                         + (4 << 20))               # compiler scratch slack
        vmem_bytes = max(vmem_bytes, 16 << 20)

        cost = pl.CostEstimate(
            flops=2 * B * K * n_pad,
            transcendentals=0,
            bytes_accessed=(n_pad * K * w_item + B * K * f_item
                            + B * n_pad * 4 + n_pad * 4),
        )

        out = pl.pallas_call(
            kernel,
            out_shape=jax.ShapeDtypeStruct((B, n_pad), jnp.float32),
            grid_spec=pltpu.PrefetchScalarGridSpec(
                num_scalar_prefetch=0,
                grid=(n_tiles,),
                in_specs=[
                    pl.BlockSpec((B, K), lambda n: (0, 0)),    # feat (resident)
                    pl.BlockSpec((tn, K), lambda n: (n, 0)),   # weight row tile
                    pl.BlockSpec((1, tn), lambda n: (0, n)),   # bias tile
                ],
                out_specs=pl.BlockSpec((B, tn), lambda n: (0, n)),
            ),
            compiler_params=pltpu.CompilerParams(
                dimension_semantics=("parallel",),   # independent N tiles
                vmem_limit_bytes=vmem_bytes,
            ),
            cost_estimate=cost,
        )(feat2d, w_prep, b_prep)

        if n_pad != N:
            out = out[:, :N]
        return out.reshape(B, num_verts, 3)

    return forward


def init_params(key, num_verts, in_ch=256 * 4 * 4):
    """Synthetic params mirroring the PyTorch init:
    weight ~ N(0, 0.01) then *= 0.01 ; bias = 0. Native (N, K) layout."""
    N = num_verts * 3
    weight = jax.random.normal(key, (N, in_ch), dtype=jnp.float32) * 0.01 * 0.01
    bias = jnp.zeros((N,), dtype=jnp.float32)
    return weight, bias


def reference_forward(feat, weight, bias, num_verts):
    B = feat.shape[0]
    feat2d = feat.reshape(B, -1)
    out = feat2d @ weight.T + bias[None, :]
    return out.reshape(B, num_verts, 3)


if __name__ == "__main__":
    key = jax.random.PRNGKey(0)
    k_feat, k_par1, k_par2 = jax.random.split(key, 3)

    B = 2
    feat = jax.random.normal(k_feat, (B, 256, 4, 4), dtype=jnp.float32)

    # --- small mesh (N = 96): single full-array tile, no padding / no slice ---
    nv_small = 32
    w_s, b_s = init_params(k_par1, nv_small)
    ref_s = reference_forward(feat, w_s, b_s, nv_small)

    fwd_s_f32 = make_texture_predictor_2d(w_s, b_s, nv_small,
                                          weight_dtype=jnp.float32)
    out_s_f32 = jax.block_until_ready(fwd_s_f32(feat))
    assert out_s_f32.shape == (B, nv_small, 3), out_s_f32.shape
    assert jnp.allclose(out_s_f32, ref_s, atol=1e-5, rtol=1e-5), "small f32 mismatch"

    fwd_s_bf16 = make_texture_predictor_2d(w_s, b_s, nv_small)   # default: bf16
    out_s_bf16 = jax.block_until_ready(fwd_s_bf16(feat))
    assert out_s_bf16.shape == (B, nv_small, 3), out_s_bf16.shape
    assert jnp.allclose(out_s_bf16, ref_s, atol=5e-4, rtol=2e-2), "small bf16 mismatch"

    # --- larger mesh (N = 2100): adaptive lane-dense N tiling (multi-step) ---
    nv_big = 700
    w_b, b_b = init_params(k_par2, nv_big)
    ref_b = reference_forward(feat, w_b, b_b, nv_big)

    fwd_b_f32 = make_texture_predictor_2d(w_b, b_b, nv_big,
                                          weight_dtype=jnp.float32)
    out_b_f32 = jax.block_until_ready(fwd_b_f32(feat))
    assert out_b_f32.shape == (B, nv_big, 3), out_b_f32.shape
    assert jnp.allclose(out_b_f32, ref_b, atol=1e-5, rtol=1e-5), "big f32 mismatch"

    fwd_b_bf16 = make_texture_predictor_2d(w_b, b_b, nv_big)     # default: bf16
    out_b_bf16 = jax.block_until_ready(fwd_b_bf16(feat))
    assert out_b_bf16.shape == (B, nv_big, 3), out_b_bf16.shape
    assert jnp.allclose(out_b_bf16, ref_b, atol=5e-4, rtol=2e-2), "big bf16 mismatch"

    print("KERNEL_OK")
</pallas_src>

<mosaic_0001>
module attributes {stable_mosaic.version = 11 : i64} {
  func.func @kernel(%arg0: i32, %arg1: memref<2x4096xf32, #tpu.memory_space<vmem>>, %arg2: memref<96x4096xf32, #tpu.memory_space<vmem>>, %arg3: memref<1x96xf32, #tpu.memory_space<vmem>>, %arg4: memref<2x96xf32, #tpu.memory_space<vmem>>) attributes {dimension_semantics = [#tpu.dimension_semantics<parallel>], iteration_bounds = array<i64: 1>, scalar_prefetch = 0 : i64, scratch_operands = 0 : i64, tpu.core_type = #tpu.core_type<tc>, window_params = [{pipeline_mode = #tpu.pipeline_mode<synchronous>, transform_indices = @transform_0, window_bounds = array<i64: 2, 4096>}, {transform_indices = @transform_1, window_bounds = array<i64: 96, 4096>}, {transform_indices = @transform_2, window_bounds = array<i64: 1, 96>}, {transform_indices = @transform_3, window_bounds = array<i64: 2, 96>}]} {
    %c0 = arith.constant 0 : index
    %c0_0 = arith.constant 0 : index
    %0 = vector.load %arg1[%c0, %c0_0] : memref<2x4096xf32, #tpu.memory_space<vmem>>, vector<2x4096xf32>
    %c0_1 = arith.constant 0 : index
    %c0_2 = arith.constant 0 : index
    %1 = vector.load %arg2[%c0_1, %c0_2] : memref<96x4096xf32, #tpu.memory_space<vmem>>, vector<96x4096xf32>
    %cst = arith.constant dense<0.000000e+00> : vector<2x96xf32>
    %2 = tpu.matmul %0, %1, %cst {dimension_numbers = #tpu.dot_dimension_numbers<[1], [1], [0], [0], [0, 0, 1, 0], [], []>} : vector<2x4096xf32>, vector<96x4096xf32>, vector<2x96xf32> -> vector<2x96xf32>
    %c0_3 = arith.constant 0 : index
    %c0_4 = arith.constant 0 : index
    %3 = vector.load %arg3[%c0_3, %c0_4] : memref<1x96xf32, #tpu.memory_space<vmem>>, vector<1x96xf32>
    %4 = vector.broadcast %3 : vector<1x96xf32> to vector<2x96xf32>
    %5 = arith.addf %2, %4 : vector<2x96xf32>
    %c0_5 = arith.constant 0 : index
    %c0_6 = arith.constant 0 : index
    %6 = vector.load %arg4[%c0_5, %c0_6] : memref<2x96xf32, #tpu.memory_space<vmem>>, vector<2x96xf32>
    tpu.vector_store %arg4[%c0_5, %c0_6], %5 {strides = array<i32>} : memref<2x96xf32, #tpu.memory_space<vmem>>, vector<2x96xf32>,
    return
  }
  func.func @transform_0(%arg0: i32) -> (i32, i32) {
    %c0_i32 = arith.constant 0 : i32
    %c0_i32_0 = arith.constant 0 : i32
    %c0_i32_1 = arith.constant 0 : i32
    return %c0_i32, %c0_i32_0 : i32, i32
  }
  func.func @transform_1(%arg0: i32) -> (i32, i32) {
    %c0_i32 = arith.constant 0 : i32
    %c0_i32_0 = arith.constant 0 : i32
    return %arg0, %c0_i32 : i32, i32
  }
  func.func @transform_2(%arg0: i32) -> (i32, i32) {
    %c0_i32 = arith.constant 0 : i32
    %c0_i32_0 = arith.constant 0 : i32
    return %c0_i32, %arg0 : i32, i32
  }
  func.func @transform_3(%arg0: i32) -> (i32, i32) {
    %c0_i32 = arith.constant 0 : i32
    %c0_i32_0 = arith.constant 0 : i32
    return %c0_i32, %arg0 : i32, i32
  }
}

</mosaic_0001>

<llo_original>
// kernel: tpu_custom_call.1
$region0: #{tpu_custom_call.1}
  #allocation0 [shape = 'u32[]', space=smem, size = 0x4, offset = 0x4, fixed_abs, tag = 'smem constant byte address 0x4 - core index']
  #allocation1 [shape = 'u32[144,128]{1,0:T(1,128)}', space=vmem, size = 0x12000, scoped, tag = 'internal scratch']
  %s0 = inlined_call_operand.hbm [shape: f32[2,4096], index: 0, kind: input, shape index: {}]
  %s1 = inlined_call_operand.hbm [shape: f32[96,4096], index: 1, kind: input, shape index: {}]
  %s2 = inlined_call_operand.hbm [shape: f32[1,96], index: 2, kind: input, shape index: {}]
  %s3 = inlined_call_operand.hbm [shape: f32[2,96], index: 3, kind: output, shape index: {}]
  %s4 = sld [smem:[#allocation0]]
  $region34: #{tpu_custom_call.1} parent=0
    _
  %s6 = ssub.s32 1, %s4
  %s7 = scalar_select 0, %s6, %s4
  $region1: #{tpu_custom_call.1} parent=0
    #allocation2 [shape = 'u8[32768]{0}', space=vmem, size = 0x8000, scoped, tag = 'input window, operand 0, single buffered']
    #allocation3 [shape = 's32[1]{0}', space=sflag, size = 0x4, scoped, tag = 'scoped memory for tpu_custom_call.1']
    #allocation4 [shape = 's32[1]{0}', space=sflag, size = 0x4, scoped, tag = 'scoped memory for tpu_custom_call.1']
    #allocation5 [shape = 'u8[1572864]{0}', space=vmem, size = 0x180000, scoped, tag = 'input window, operand 1, single buffered']
    #allocation6 [shape = 's32[1]{0}', space=sflag, size = 0x4, scoped, tag = 'scoped memory for tpu_custom_call.1']
    #allocation7 [shape = 'u8[512]{0}', space=vmem, size = 0x400, scoped, tag = 'input window, operand 2, single buffered']
    #allocation8 [shape = 'u8[1024]{0}', space=vmem, size = 0x400, scoped, tag = 'output window, operand 0, single buffered']
    %8 = vsyncpa [#allocation3], 0
    %9 = vsyncpa [#allocation6], 0
    %10 = vsyncpa [#allocation4], 0
    // Predicated region
    $region2: #{tpu_custom_call.1} parent=1 // pred_check
      _
    $region3: #{tpu_custom_call.1} parent=1 // pred_check_branch
      %12 = sbr.rel (0) target = $region5
    $region4: #{tpu_custom_call.1} parent=1 // pred_region
      %s14 = ssub.s32 1024, 1024
      %15 = vsyncadd [#allocation3], %s14
      %s17 = sshll.u32 [#allocation2], 4
      %s18 = int_to_ptr.vmem [resolvable:$true] %s17
      %20 = dma.hbm_to_vmem [thread:$0]  %s0, 1024, %s18, [#allocation3]
    $region5: #{tpu_custom_call.1} parent=1 // pred_fallthru
      _
    // Predicated region
    $region6: #{tpu_custom_call.1} parent=1 // pred_check
      _
    $region7: #{tpu_custom_call.1} parent=1 // pred_check_branch
      %22 = sbr.rel (0) target = $region9
    $region8: #{tpu_custom_call.1} parent=1 // pred_region
      %s24 = ssub.s32 49152, 49152
      %25 = vsyncadd [#allocation6], %s24
      %s26 = sshll.u32 [#allocation5], 4
      %s27 = int_to_ptr.vmem [resolvable:$true] %s26
      %32 = dma.hbm_to_vmem [thread:$0]  %s1, 49152, %s27, [#allocation6], 4096, 4096, 256
    $region9: #{tpu_custom_call.1} parent=1 // pred_fallthru
      _
    // Predicated region
    $region10: #{tpu_custom_call.1} parent=1 // pred_check
      _
    $region11: #{tpu_custom_call.1} parent=1 // pred_check_branch
      %34 = sbr.rel (0) target = $region13
    $region12: #{tpu_custom_call.1} parent=1 // pred_region
      %s36 = ssub.s32 16, 16
      %37 = vsyncadd [#allocation6], %s36
      %s39 = sshll.u32 [#allocation7], 4
      %s40 = int_to_ptr.vmem [resolvable:$true] %s39
      %42 = dma.hbm_to_vmem [thread:$0]  %s2, 16, %s40, [#allocation6]
    $region13: #{tpu_custom_call.1} parent=1 // pred_fallthru
      _
    // Predicated region
    $region14: #{tpu_custom_call.1} parent=1 // pred_check
      _
    $region15: #{tpu_custom_call.1} parent=1 // pred_check_branch
      %44 = sbr.rel (0) target = $region17
    $region16: #{tpu_custom_call.1} parent=1 // pred_region
      %45 = dma.done [#allocation3], 1024
    $region17: #{tpu_custom_call.1} parent=1 // pred_fallthru
      _
    // Predicated region
    $region18: #{tpu_custom_call.1} parent=1 // pred_check
      _
    $region19: #{tpu_custom_call.1} parent=1 // pred_check_branch
      %47 = sbr.rel (0) target = $region21
    $region20: #{tpu_custom_call.1} parent=1 // pred_region
      %48 = dma.done [#allocation6], 49152
    $region21: #{tpu_custom_call.1} parent=1 // pred_fallthru
      _
    // Predicated region
    $region22: #{tpu_custom_call.1} parent=1 // pred_check
      _
    $region23: #{tpu_custom_call.1} parent=1 // pred_check_branch
      %50 = sbr.rel (0) target = $region25
    $region24: #{tpu_custom_call.1} parent=1 // pred_region
      %51 = dma.done [#allocation6], 16
    $region25: #{tpu_custom_call.1} parent=1 // pred_fallthru
      _
    %v52 = vld [vmem:[#allocation2] sm:$0xff]
    %v53 = vld [vmem:[#allocation2 + $0x8] sm:$0xff]
    %v54 = vld [vmem:[#allocation2 + $0x10] sm:$0xff]
    %v55 = vld [vmem:[#allocation2 + $0x18] sm:$0xff]
    %v56 = vld [vmem:[#allocation2 + $0x20] sm:$0xff]
    %v57 = vld [vmem:[#allocation2 + $0x28] sm:$0xff]
    %v58 = vld [vmem:[#allocation2 + $0x30] sm:$0xff]
    %v59 = vld [vmem:[#allocation2 + $0x38] sm:$0xff]
    %v60 = vld [vmem:[#allocation5] sm:$0xff]
    %v61 = vld [vmem:[#allocation5 + $0x8] sm:$0xff]
    %v62 = vld [vmem:[#allocation5 + $0x10] sm:$0xff]
    %v63 = vld [vmem:[#allocation5 + $0x18] sm:$0xff]
    %v64 = vld [vmem:[#allocation5 + $0x20] sm:$0xff]
    %v65 = vld [vmem:[#allocation5 + $0x28] sm:$0xff]
    %v66 = vld [vmem:[#allocation5 + $0x30] sm:$0xff]
    %v67 = vld [vmem:[#allocation5 + $0x38] sm:$0xff]
    %v68 = vld [vmem:[#allocation5 + $0x40] sm:$0xff]
    %v69 = vld [vmem:[#allocation5 + $0x48] sm:$0xff]
    %v70 = vld [vmem:[#allocation5 + $0x50] sm:$0xff]
    %v71 = vld [vmem:[#allocation5 + $0x58] sm:$0xff]
    %v72 = vld [vmem:[#allocation5 + $0x60] sm:$0xff]
    %v73 = vld [vmem:[#allocation5 + $0x68] sm:$0xff]
    %v74 = vld [vmem:[#allocation5 + $0x70] sm:$0xff]
    %v75 = vld [vmem:[#allocation5 + $0x78] sm:$0xff]
    %v76 = vld [vmem:[#allocation5 + $0x80] sm:$0xff]
    %v77 = vld [vmem:[#allocation5 + $0x88] sm:$0xff]
    %v78 = vld [vmem:[#allocation5 + $0x90] sm:$0xff]
    %v79 = vld [vmem:[#allocation5 + $0x98] sm:$0xff]
    %v80 = vld [vmem:[#allocation5 + $0xa0] sm:$0xff]
    %v81 = vld [vmem:[#allocation5 + $0xa8] sm:$0xff]
    %v82 = vld [vmem:[#allocation5 + $0xb0] sm:$0xff]
    %v83 = vld [vmem:[#allocation5 + $0xb8] sm:$0xff]
    %v84 = vld [vmem:[#allocation5 + $0xc0] sm:$0xff]
    %v85 = vld [vmem:[#allocation5 + $0xc8] sm:$0xff]
    %v86 = vld [vmem:[#allocation5 + $0xd0] sm:$0xff]
    %v87 = vld [vmem:[#allocation5 + $0xd8] sm:$0xff]
    %v88 = vld [vmem:[#allocation5 + $0xe0] sm:$0xff]
    %v89 = vld [vmem:[#allocation5 + $0xe8] sm:$0xff]
    %v90 = vld [vmem:[#allocation5 + $0xf0] sm:$0xff]
    %v91 = vld [vmem:[#allocation5 + $0xf8] sm:$0xff]
    %v92 = vld [vmem:[#allocation5 + $0x100] sm:$0xff]
    %v93 = vld [vmem:[#allocation5 + $0x108] sm:$0xff]
    %v94 = vld [vmem:[#allocation5 + $0x110] sm:$0xff]
    %v95 = vld [vmem:[#allocation5 + $0x118] sm:$0xff]
    %v96 = vld [vmem:[#allocation5 + $0x120] sm:$0xff]
    %v97 = vld [vmem:[#allocation5 + $0x128] sm:$0xff]
    %v98 = vld [vmem:[#allocation5 + $0x130] sm:$0xff]
    %v99 = vld [vmem:[#allocation5 + $0x138] sm:$0xff]
    %v100 = vld [vmem:[#allocation5 + $0x140] sm:$0xff]
    %v101 = vld [vmem:[#allocation5 + $0x148] sm:$0xff]
    %v102 = vld [vmem:[#allocation5 + $0x150] sm:$0xff]
    %v103 = vld [vmem:[#allocation5 + $0x158] sm:$0xff]
    %v104 = vld [vmem:[#allocation5 + $0x160] sm:$0xff]
    %v105 = vld [vmem:[#allocation5 + $0x168] sm:$0xff]
    %v106 = vld [vmem:[#allocation5 + $0x170] sm:$0xff]
    %v107 = vld [vmem:[#allocation5 + $0x178] sm:$0xff]
    %v108 = vld [vmem:[#allocation5 + $0x180] sm:$0xff]
    %v109 = vld [vmem:[#allocation5 + $0x188] sm:$0xff]
    %v110 = vld [vmem:[#allocation5 + $0x190] sm:$0xff]
    %v111 = vld [vmem:[#allocation5 + $0x198] sm:$0xff]
    %v112 = vld [vmem:[#allocation5 + $0x1a0] sm:$0xff]
    %v113 = vld [vmem:[#allocation5 + $0x1a8] sm:$0xff]
    %v114 = vld [vmem:[#allocation5 + $0x1b0] sm:$0xff]
    %v115 = vld [vmem:[#allocation5 + $0x1b8] sm:$0xff]
    %v116 = vld [vmem:[#allocation5 + $0x1c0] sm:$0xff]
    %v117 = vld [vmem:[#allocation5 + $0x1c8] sm:$0xff]
    %v118 = vld [vmem:[#allocation5 + $0x1d0] sm:$0xff]
    %v119 = vld [vmem:[#allocation5 + $0x1d8] sm:$0xff]
    %v120 = vld [vmem:[#allocation5 + $0x1e0] sm:$0xff]
    %v121 = vld [vmem:[#allocation5 + $0x1e8] sm:$0xff]
    %v122 = vld [vmem:[#allocation5 + $0x1f0] sm:$0xff]
    %v123 = vld [vmem:[#allocation5 + $0x1f8] sm:$0xff]
    %v124 = vld [vmem:[#allocation5 + $0x200] sm:$0xff]
    %v125 = vld [vmem:[#allocation5 + $0x208] sm:$0xff]
    %v126 = vld [vmem:[#allocation5 + $0x210] sm:$0xff]
    %v127 = vld [vmem:[#allocation5 + $0x218] sm:$0xff]
    %v128 = vld [vmem:[#allocation5 + $0x220] sm:$0xff]
    %v129 = vld [vmem:[#allocation5 + $0x228] sm:$0xff]
    %v130 = vld [vmem:[#allocation5 + $0x230] sm:$0xff]
    %v131 = vld [vmem:[#allocation5 + $0x238] sm:$0xff]
    %v132 = vld [vmem:[#allocation5 + $0x240] sm:$0xff]
    %v133 = vld [vmem:[#allocation5 + $0x248] sm:$0xff]
    %v134 = vld [vmem:[#allocation5 + $0x250] sm:$0xff]
    %v135 = vld [vmem:[#allocation5 + $0x258] sm:$0xff]
    %v136 = vld [vmem:[#allocation5 + $0x260] sm:$0xff]
    %v137 = vld [vmem:[#allocation5 + $0x268] sm:$0xff]
    %v138 = vld [vmem:[#allocation5 + $0x270] sm:$0xff]
    %v139 = vld [vmem:[#allocation5 + $0x278] sm:$0xff]
    %v140 = vld [vmem:[#allocation5 + $0x280] sm:$0xff]
    %v141 = vld [vmem:[#allocation5 + $0x288] sm:$0xff]
    %v142 = vld [vmem:[#allocation5 + $0x290] sm:$0xff]
    %v143 = vld [vmem:[#allocation5 + $0x298] sm:$0xff]
    %v144 = vld [vmem:[#allocation5 + $0x2a0] sm:$0xff]
    %v145 = vld [vmem:[#allocation5 + $0x2a8] sm:$0xff]
    %v146 = vld [vmem:[#allocation5 + $0x2b0] sm:$0xff]
    %v147 = vld [vmem:[#allocation5 + $0x2b8] sm:$0xff]
    %v148 = vld [vmem:[#allocation5 + $0x2c0] sm:$0xff]
    %v149 = vld [vmem:[#allocation5 + $0x2c8] sm:$0xff]
    %v150 = vld [vmem:[#allocation5 + $0x2d0] sm:$0xff]
    %v151 = vld [vmem:[#allocation5 + $0x2d8] sm:$0xff]
    %v152 = vld [vmem:[#allocation5 + $0x2e0] sm:$0xff]
    %v153 = vld [vmem:[#allocation5 + $0x2e8] sm:$0xff]
    %v154 = vld [vmem:[#allocation5 + $0x2f0] sm:$0xff]
    %v155 = vld [vmem:[#allocation5 + $0x2f8] sm:$0xff]
    %v156 = vld [vmem:[#allocation5 + $0x300] sm:$0xff]
    %v157 = vld [vmem:[#allocation5 + $0x308] sm:$0xff]
    %v158 = vld [vmem:[#allocation5 + $0x310] sm:$0xff]
    %v159 = vld [vmem:[#allocation5 + $0x318] sm:$0xff]
    %v160 = vld [vmem:[#allocation5 + $0x320] sm:$0xff]
    %v161 = vld [vmem:[#allocation5 + $0x328] sm:$0xff]
    %v162 = vld [vmem:[#allocation5 + $0x330] sm:$0xff]
    %v163 = vld [vmem:[#allocation5 + $0x338] sm:$0xff]
    %v164 = vld [vmem:[#allocation5 + $0x340] sm:$0xff]
    %v165 = vld [vmem:[#allocation5 + $0x348] sm:$0xff]
    %v166 = vld [vmem:[#allocation5 + $0x350] sm:$0xff]
    %v167 = vld [vmem:[#allocation5 + $0x358] sm:$0xff]
    %v168 = vld [vmem:[#allocation5 + $0x360] sm:$0xff]
    %v169 = vld [vmem:[#allocation5 + $0x368] sm:$0xff]
    %v170 = vld [vmem:[#allocation5 + $0x370] sm:$0xff]
    %v171 = vld [vmem:[#allocation5 + $0x378] sm:$0xff]
    %v172 = vld [vmem:[#allocation5 + $0x380] sm:$0xff]
    %v173 = vld [vmem:[#allocation5 + $0x388] sm:$0xff]
    %v174 = vld [vmem:[#allocation5 + $0x390] sm:$0xff]
    %v175 = vld [vmem:[#allocation5 + $0x398] sm:$0xff]
    %v176 = vld [vmem:[#allocation5 + $0x3a0] sm:$0xff]
    %v177 = vld [vmem:[#allocation5 + $0x3a8] sm:$0xff]
    %v178 = vld [vmem:[#allocation5 + $0x3b0] sm:$0xff]
    %v179 = vld [vmem:[#allocation5 + $0x3b8] sm:$0xff]
    %v180 = vld [vmem:[#allocation5 + $0x3c0] sm:$0xff]
    %v181 = vld [vmem:[#allocation5 + $0x3c8] sm:$0xff]
    %v182 = vld [vmem:[#allocation5 + $0x3d0] sm:$0xff]
    %v183 = vld [vmem:[#allocation5 + $0x3d8] sm:$0xff]
    %v184 = vld [vmem:[#allocation5 + $0x3e0] sm:$0xff]
    %v185 = vld [vmem:[#allocation5 + $0x3e8] sm:$0xff]
    %v186 = vld [vmem:[#allocation5 + $0x3f0] sm:$0xff]
    %v187 = vld [vmem:[#allocation5 + $0x3f8] sm:$0xff]
    %v188 = vld [vmem:[#allocation5 + $0x400] sm:$0xff]
    %v189 = vld [vmem:[#allocation5 + $0x408] sm:$0xff]
    %v190 = vld [vmem:[#allocation5 + $0x410] sm:$0xff]
    %v191 = vld [vmem:[#allocation5 + $0x418] sm:$0xff]
    %v192 = vld [vmem:[#allocation5 + $0x420] sm:$0xff]
    %v193 = vld [vmem:[#allocation5 + $0x428] sm:$0xff]
    %v194 = vld [vmem:[#allocation5 + $0x430] sm:$0xff]
    %v195 = vld [vmem:[#allocation5 + $0x438] sm:$0xff]
    %v196 = vld [vmem:[#allocation5 + $0x440] sm:$0xff]
    %v197 = vld [vmem:[#allocation5 + $0x448] sm:$0xff]
    %v198 = vld [vmem:[#allocation5 + $0x450] sm:$0xff]
    %v199 = vld [vmem:[#allocation5 + $0x458] sm:$0xff]
    %v200 = vld [vmem:[#allocation5 + $0x460] sm:$0xff]
    %v201 = vld [vmem:[#allocation5 + $0x468] sm:$0xff]
    %v202 = vld [vmem:[#allocation5 + $0x470] sm:$0xff]
    %v203 = vld [vmem:[#allocation5 + $0x478] sm:$0xff]
    %v204 = vld [vmem:[#allocation5 + $0x480] sm:$0xff]
    %v205 = vld [vmem:[#allocation5 + $0x488] sm:$0xff]
    %v206 = vld [vmem:[#allocation5 + $0x490] sm:$0xff]
    %v207 = vld [vmem:[#allocation5 + $0x498] sm:$0xff]
    %v208 = vld [vmem:[#allocation5 + $0x4a0] sm:$0xff]
    %v209 = vld [vmem:[#allocation5 + $0x4a8] sm:$0xff]
    %v210 = vld [vmem:[#allocation5 + $0x4b0] sm:$0xff]
    %v211 = vld [vmem:[#allocation5 + $0x4b8] sm:$0xff]
    %v212 = vld [vmem:[#allocation5 + $0x4c0] sm:$0xff]
    %v213 = vld [vmem:[#allocation5 + $0x4c8] sm:$0xff]
    %v214 = vld [vmem:[#allocation5 + $0x4d0] sm:$0xff]
    %v215 = vld [vmem:[#allocation5 + $0x4d8] sm:$0xff]
    %v216 = vld [vmem:[#allocation5 + $0x4e0] sm:$0xff]
    %v217 = vld [vmem:[#allocation5 + $0x4e8] sm:$0xff]
    %v218 = vld [vmem:[#allocation5 + $0x4f0] sm:$0xff]
    %v219 = vld [vmem:[#allocation5 + $0x4f8] sm:$0xff]
    %v220 = vld [vmem:[#allocation5 + $0x500] sm:$0xff]
    %v221 = vld [vmem:[#allocation5 + $0x508] sm:$0xff]
    %v222 = vld [vmem:[#allocation5 + $0x510] sm:$0xff]
    %v223 = vld [vmem:[#allocation5 + $0x518] sm:$0xff]
    %v224 = vld [vmem:[#allocation5 + $0x520] sm:$0xff]
    %v225 = vld [vmem:[#allocation5 + $0x528] sm:$0xff]
    %v226 = vld [vmem:[#allocation5 + $0x530] sm:$0xff]
    %v227 = vld [vmem:[#allocation5 + $0x538] sm:$0xff]
    %v228 = vld [vmem:[#allocation5 + $0x540] sm:$0xff]
    %v229 = vld [vmem:[#allocation5 + $0x548] sm:$0xff]
    %v230 = vld [vmem:[#allocation5 + $0x550] sm:$0xff]
    %v231 = vld [vmem:[#allocation5 + $0x558] sm:$0xff]
    %v232 = vld [vmem:[#allocation5 + $0x560] sm:$0xff]
    %v233 = vld [vmem:[#allocation5 + $0x568] sm:$0xff]
    %v234 = vld [vmem:[#allocation5 + $0x570] sm:$0xff]
    %v235 = vld [vmem:[#allocation5 + $0x578] sm:$0xff]
    %v236 = vld [vmem:[#allocation5 + $0x580] sm:$0xff]
    %v237 = vld [vmem:[#allocation5 + $0x588] sm:$0xff]
    %v238 = vld [vmem:[#allocation5 + $0x590] sm:$0xff]
    %v239 = vld [vmem:[#allocation5 + $0x598] sm:$0xff]
    %v240 = vld [vmem:[#allocation5 + $0x5a0] sm:$0xff]
    %v241 = vld [vmem:[#allocation5 + $0x5a8] sm:$0xff]
    %v242 = vld [vmem:[#allocation5 + $0x5b0] sm:$0xff]
    %v243 = vld [vmem:[#allocation5 + $0x5b8] sm:$0xff]
    %v244 = vld [vmem:[#allocation5 + $0x5c0] sm:$0xff]
    %v245 = vld [vmem:[#allocation5 + $0x5c8] sm:$0xff]
    %v246 = vld [vmem:[#allocation5 + $0x5d0] sm:$0xff]
    %v247 = vld [vmem:[#allocation5 + $0x5d8] sm:$0xff]
    %v248 = vld [vmem:[#allocation5 + $0x5e0] sm:$0xff]
    %v249 = vld [vmem:[#allocation5 + $0x5e8] sm:$0xff]
    %v250 = vld [vmem:[#allocation5 + $0x5f0] sm:$0xff]
    %v251 = vld [vmem:[#allocation5 + $0x5f8] sm:$0xff]
    %v252 = vld [vmem:[#allocation5 + $0x600] sm:$0xff]
    %v253 = vld [vmem:[#allocation5 + $0x608] sm:$0xff]
    %v254 = vld [vmem:[#allocation5 + $0x610] sm:$0xff]
    %v255 = vld [vmem:[#allocation5 + $0x618] sm:$0xff]
    %v256 = vld [vmem:[#allocation5 + $0x620] sm:$0xff]
    %v257 = vld [vmem:[#allocation5 + $0x628] sm:$0xff]
    %v258 = vld [vmem:[#allocation5 + $0x630] sm:$0xff]
    %v259 = vld [vmem:[#allocation5 + $0x638] sm:$0xff]
    %v260 = vld [vmem:[#allocation5 + $0x640] sm:$0xff]
    %v261 = vld [vmem:[#allocation5 + $0x648] sm:$0xff]
    %v262 = vld [vmem:[#allocation5 + $0x650] sm:$0xff]
    %v263 = vld [vmem:[#allocation5 + $0x658] sm:$0xff]
    %v264 = vld [vmem:[#allocation5 + $0x660] sm:$0xff]
    %v265 = vld [vmem:[#allocation5 + $0x668] sm:$0xff]
    %v266 = vld [vmem:[#allocation5 + $0x670] sm:$0xff]
    %v267 = vld [vmem:[#allocation5 + $0x678] sm:$0xff]
    %v268 = vld [vmem:[#allocation5 + $0x680] sm:$0xff]
    %v269 = vld [vmem:[#allocation5 + $0x688] sm:$0xff]
    %v270 = vld [vmem:[#allocation5 + $0x690] sm:$0xff]
    %v271 = vld [vmem:[#allocation5 + $0x698] sm:$0xff]
    %v272 = vld [vmem:[#allocation5 + $0x6a0] sm:$0xff]
    %v273 = vld [vmem:[#allocation5 + $0x6a8] sm:$0xff]
    %v274 = vld [vmem:[#allocation5 + $0x6b0] sm:$0xff]
    %v275 = vld [vmem:[#allocation5 + $0x6b8] sm:$0xff]
    %v276 = vld [vmem:[#allocation5 + $0x6c0] sm:$0xff]
    %v277 = vld [vmem:[#allocation5 + $0x6c8] sm:$0xff]
    %v278 = vld [vmem:[#allocation5 + $0x6d0] sm:$0xff]
    %v279 = vld [vmem:[#allocation5 + $0x6d8] sm:$0xff]
    %v280 = vld [vmem:[#allocation5 + $0x6e0] sm:$0xff]
    %v281 = vld [vmem:[#allocation5 + $0x6e8] sm:$0xff]
    %v282 = vld [vmem:[#allocation5 + $0x6f0] sm:$0xff]
    %v283 = vld [vmem:[#allocation5 + $0x6f8] sm:$0xff]
    %v284 = vld [vmem:[#allocation5 + $0x700] sm:$0xff]
    %v285 = vld [vmem:[#allocation5 + $0x708] sm:$0xff]
    %v286 = vld [vmem:[#allocation5 + $0x710] sm:$0xff]
    %v287 = vld [vmem:[#allocation5 + $0x718] sm:$0xff]
    %v288 = vld [vmem:[#allocation5 + $0x720] sm:$0xff]
    %v289 = vld [vmem:[#allocation5 + $0x728] sm:$0xff]
    %v290 = vld [vmem:[#allocation5 + $0x730] sm:$0xff]
    %v291 = vld [vmem:[#allocation5 + $0x738] sm:$0xff]
    %v292 = vld [vmem:[#allocation5 + $0x740] sm:$0xff]
    %v293 = vld [vmem:[#allocation5 + $0x748] sm:$0xff]
    %v294 = vld [vmem:[#allocation5 + $0x750] sm:$0xff]
    %v295 = vld [vmem:[#allocation5 + $0x758] sm:$0xff]
    %v296 = vld [vmem:[#allocation5 + $0x760] sm:$0xff]
    %v297 = vld [vmem:[#allocation5 + $0x768] sm:$0xff]
    %v298 = vld [vmem:[#allocation5 + $0x770] sm:$0xff]
    %v299 = vld [vmem:[#allocation5 + $0x778] sm:$0xff]
    %v300 = vld [vmem:[#allocation5 + $0x780] sm:$0xff]
    %v301 = vld [vmem:[#allocation5 + $0x788] sm:$0xff]
    %v302 = vld [vmem:[#allocation5 + $0x790] sm:$0xff]
    %v303 = vld [vmem:[#allocation5 + $0x798] sm:$0xff]
    %v304 = vld [vmem:[#allocation5 + $0x7a0] sm:$0xff]
    %v305 = vld [vmem:[#allocation5 + $0x7a8] sm:$0xff]
    %v306 = vld [vmem:[#allocation5 + $0x7b0] sm:$0xff]
    %v307 = vld [vmem:[#allocation5 + $0x7b8] sm:$0xff]
    %v308 = vld [vmem:[#allocation5 + $0x7c0] sm:$0xff]
    %v309 = vld [vmem:[#allocation5 + $0x7c8] sm:$0xff]
    %v310 = vld [vmem:[#allocation5 + $0x7d0] sm:$0xff]
    %v311 = vld [vmem:[#allocation5 + $0x7d8] sm:$0xff]
    %v312 = vld [vmem:[#allocation5 + $0x7e0] sm:$0xff]
    %v313 = vld [vmem:[#allocation5 + $0x7e8] sm:$0xff]
    %v314 = vld [vmem:[#allocation5 + $0x7f0] sm:$0xff]
    %v315 = vld [vmem:[#allocation5 + $0x7f8] sm:$0xff]
    %v316 = vld [vmem:[#allocation5 + $0x800] sm:$0xff]
    %v317 = vld [vmem:[#allocation5 + $0x808] sm:$0xff]
    %v318 = vld [vmem:[#allocation5 + $0x810] sm:$0xff]
    %v319 = vld [vmem:[#allocation5 + $0x818] sm:$0xff]
    %v320 = vld [vmem:[#allocation5 + $0x820] sm:$0xff]
    %v321 = vld [vmem:[#allocation5 + $0x828] sm:$0xff]
    %v322 = vld [vmem:[#allocation5 + $0x830] sm:$0xff]
    %v323 = vld [vmem:[#allocation5 + $0x838] sm:$0xff]
    %v324 = vld [vmem:[#allocation5 + $0x840] sm:$0xff]
    %v325 = vld [vmem:[#allocation5 + $0x848] sm:$0xff]
    %v326 = vld [vmem:[#allocation5 + $0x850] sm:$0xff]
    %v327 = vld [vmem:[#allocation5 + $0x858] sm:$0xff]
    %v328 = vld [vmem:[#allocation5 + $0x860] sm:$0xff]
    %v329 = vld [vmem:[#allocation5 + $0x868] sm:$0xff]
    %v330 = vld [vmem:[#allocation5 + $0x870] sm:$0xff]
    %v331 = vld [vmem:[#allocation5 + $0x878] sm:$0xff]
    %v332 = vld [vmem:[#allocation5 + $0x880] sm:$0xff]
    %v333 = vld [vmem:[#allocation5 + $0x888] sm:$0xff]
    %v334 = vld [vmem:[#allocation5 + $0x890] sm:$0xff]
    %v335 = vld [vmem:[#allocation5 + $0x898] sm:$0xff]
    %v336 = vld [vmem:[#allocation5 + $0x8a0] sm:$0xff]
    %v337 = vld [vmem:[#allocation5 + $0x8a8] sm:$0xff]
    %v338 = vld [vmem:[#allocation5 + $0x8b0] sm:$0xff]
    %v339 = vld [vmem:[#allocation5 + $0x8b8] sm:$0xff]
    %v340 = vld [vmem:[#allocation5 + $0x8c0] sm:$0xff]
    %v341 = vld [vmem:[#allocation5 + $0x8c8] sm:$0xff]
    %v342 = vld [vmem:[#allocation5 + $0x8d0] sm:$0xff]
    %v343 = vld [vmem:[#allocation5 + $0x8d8] sm:$0xff]
    %v344 = vld [vmem:[#allocation5 + $0x8e0] sm:$0xff]
    %v345 = vld [vmem:[#allocation5 + $0x8e8] sm:$0xff]
    %v346 = vld [vmem:[#allocation5 + $0x8f0] sm:$0xff]
    %v347 = vld [vmem:[#allocation5 + $0x8f8] sm:$0xff]
    %v348 = vld [vmem:[#allocation5 + $0x900] sm:$0xff]
    %v349 = vld [vmem:[#allocation5 + $0x908] sm:$0xff]
    %v350 = vld [vmem:[#allocation5 + $0x910] sm:$0xff]
    %v351 = vld [vmem:[#allocation5 + $0x918] sm:$0xff]
    %v352 = vld [vmem:[#allocation5 + $0x920] sm:$0xff]
    %v353 = vld [vmem:[#allocation5 + $0x928] sm:$0xff]
    %v354 = vld [vmem:[#allocation5 + $0x930] sm:$0xff]
    %v355 = vld [vmem:[#allocation5 + $0x938] sm:$0xff]
    %v356 = vld [vmem:[#allocation5 + $0x940] sm:$0xff]
    %v357 = vld [vmem:[#allocation5 + $0x948] sm:$0xff]
    %v358 = vld [vmem:[#allocation5 + $0x950] sm:$0xff]
    %v359 = vld [vmem:[#allocation5 + $0x958] sm:$0xff]
    %v360 = vld [vmem:[#allocation5 + $0x960] sm:$0xff]
    %v361 = vld [vmem:[#allocation5 + $0x968] sm:$0xff]
    %v362 = vld [vmem:[#allocation5 + $0x970] sm:$0xff]
    %v363 = vld [vmem:[#allocation5 + $0x978] sm:$0xff]
    %v364 = vld [vmem:[#allocation5 + $0x980] sm:$0xff]
    %v365 = vld [vmem:[#allocation5 + $0x988] sm:$0xff]
    %v366 = vld [vmem:[#allocation5 + $0x990] sm:$0xff]
    %v367 = vld [vmem:[#allocation5 + $0x998] sm:$0xff]
    %v368 = vld [vmem:[#allocation5 + $0x9a0] sm:$0xff]
    %v369 = vld [vmem:[#allocation5 + $0x9a8] sm:$0xff]
    %v370 = vld [vmem:[#allocation5 + $0x9b0] sm:$0xff]
    %v371 = vld [vmem:[#allocation5 + $0x9b8] sm:$0xff]
    %v372 = vld [vmem:[#allocation5 + $0x9c0] sm:$0xff]
    %v373 = vld [vmem:[#allocation5 + $0x9c8] sm:$0xff]
    %v374 = vld [vmem:[#allocation5 + $0x9d0] sm:$0xff]
    %v375 = vld [vmem:[#allocation5 + $0x9d8] sm:$0xff]
    %v376 = vld [vmem:[#allocation5 + $0x9e0] sm:$0xff]
    %v377 = vld [vmem:[#allocation5 + $0x9e8] sm:$0xff]
    %v378 = vld [vmem:[#allocation5 + $0x9f0] sm:$0xff]
    %v379 = vld [vmem:[#allocation5 + $0x9f8] sm:$0xff]
    %v380 = vld [vmem:[#allocation5 + $0xa00] sm:$0xff]
    %v381 = vld [vmem:[#allocation5 + $0xa08] sm:$0xff]
    %v382 = vld [vmem:[#allocation5 + $0xa10] sm:$0xff]
    %v383 = vld [vmem:[#allocation5 + $0xa18] sm:$0xff]
    %v384 = vld [vmem:[#allocation5 + $0xa20] sm:$0xff]
    %v385 = vld [vmem:[#allocation5 + $0xa28] sm:$0xff]
    %v386 = vld [vmem:[#allocation5 + $0xa30] sm:$0xff]
    %v387 = vld [vmem:[#allocation5 + $0xa38] sm:$0xff]
    %v388 = vld [vmem:[#allocation5 + $0xa40] sm:$0xff]
    %v389 = vld [vmem:[#allocation5 + $0xa48] sm:$0xff]
    %v390 = vld [vmem:[#allocation5 + $0xa50] sm:$0xff]
    %v391 = vld [vmem:[#allocation5 + $0xa58] sm:$0xff]
    %v392 = vld [vmem:[#allocation5 + $0xa60] sm:$0xff]
    %v393 = vld [vmem:[#allocation5 + $0xa68] sm:$0xff]
    %v394 = vld [vmem:[#allocation5 + $0xa70] sm:$0xff]
    %v395 = vld [vmem:[#allocation5 + $0xa78] sm:$0xff]
    %v396 = vld [vmem:[#allocation5 + $0xa80] sm:$0xff]
    %v397 = vld [vmem:[#allocation5 + $0xa88] sm:$0xff]
    %v398 = vld [vmem:[#allocation5 + $0xa90] sm:$0xff]
    %v399 = vld [vmem:[#allocation5 + $0xa98] sm:$0xff]
    %v400 = vld [vmem:[#allocation5 + $0xaa0] sm:$0xff]
    %v401 = vld [vmem:[#allocation5 + $0xaa8] sm:$0xff]
    %v402 = vld [vmem:[#allocation5 + $0xab0] sm:$0xff]
    %v403 = vld [vmem:[#allocation5 + $0xab8] sm:$0xff]
    %v404 = vld [vmem:[#allocation5 + $0xac0] sm:$0xff]
    %v405 = vld [vmem:[#allocation5 + $0xac8] sm:$0xff]
    %v406 = vld [vmem:[#allocation5 + $0xad0] sm:$0xff]
    %v407 = vld [vmem:[#allocation5 + $0xad8] sm:$0xff]
    %v408 = vld [vmem:[#allocation5 + $0xae0] sm:$0xff]
    %v409 = vld [vmem:[#allocation5 + $0xae8] sm:$0xff]
    %v410 = vld [vmem:[#allocation5 + $0xaf0] sm:$0xff]
    %v411 = vld [vmem:[#allocation5 + $0xaf8] sm:$0xff]
    %v412 = vld [vmem:[#allocation5 + $0xb00] sm:$0xff]
    %v413 = vld [vmem:[#allocation5 + $0xb08] sm:$0xff]
    %v414 = vld [vmem:[#allocation5 + $0xb10] sm:$0xff]
    %v415 = vld [vmem:[#allocation5 + $0xb18] sm:$0xff]
    %v416 = vld [vmem:[#allocation5 + $0xb20] sm:$0xff]
    %v417 = vld [vmem:[#allocation5 + $0xb28] sm:$0xff]
    %v418 = vld [vmem:[#allocation5 + $0xb30] sm:$0xff]
    %v419 = vld [vmem:[#allocation5 + $0xb38] sm:$0xff]
    %v420 = vld [vmem:[#allocation5 + $0xb40] sm:$0xff]
    %v421 = vld [vmem:[#allocation5 + $0xb48] sm:$0xff]
    %v422 = vld [vmem:[#allocation5 + $0xb50] sm:$0xff]
    %v423 = vld [vmem:[#allocation5 + $0xb58] sm:$0xff]
    %v424 = vld [vmem:[#allocation5 + $0xb60] sm:$0xff]
    %v425 = vld [vmem:[#allocation5 + $0xb68] sm:$0xff]
    %v426 = vld [vmem:[#allocation5 + $0xb70] sm:$0xff]
    %v427 = vld [vmem:[#allocation5 + $0xb78] sm:$0xff]
    %v428 = vld [vmem:[#allocation5 + $0xb80] sm:$0xff]
    %v429 = vld [vmem:[#allocation5 + $0xb88] sm:$0xff]
    %v430 = vld [vmem:[#allocation5 + $0xb90] sm:$0xff]
    %v431 = vld [vmem:[#allocation5 + $0xb98] sm:$0xff]
    %v432 = vld [vmem:[#allocation5 + $0xba0] sm:$0xff]
    %v433 = vld [vmem:[#allocation5 + $0xba8] sm:$0xff]
    %v434 = vld [vmem:[#allocation5 + $0xbb0] sm:$0xff]
    %v435 = vld [vmem:[#allocation5 + $0xbb8] sm:$0xff]
    %v436 = vld [vmem:[#allocation5 + $0xbc0] sm:$0xff]
    %v437 = vld [vmem:[#allocation5 + $0xbc8] sm:$0xff]
    %v438 = vld [vmem:[#allocation5 + $0xbd0] sm:$0xff]
    %v439 = vld [vmem:[#allocation5 + $0xbd8] sm:$0xff]
    %v440 = vld [vmem:[#allocation5 + $0xbe0] sm:$0xff]
    %v441 = vld [vmem:[#allocation5 + $0xbe8] sm:$0xff]
    %v442 = vld [vmem:[#allocation5 + $0xbf0] sm:$0xff]
    %v443 = vld [vmem:[#allocation5 + $0xbf8] sm:$0xff]
    %v444 = vld [vmem:[#allocation7] sm:$0x1]
    %v446 = vlaneseq
    %v447 = vshrl.u32 %v446, 7
    %v448 = vsub.s32 0, %v447
    %v449 = vrot.slane %v444, %v448
    %v459 = vcombine.high %v52, %v52
    %v461 = vunpack.c.l.s4 1983009808
    %v462 = vunpack.c.0.s8 %v461
    %v463 = vlaneseq
    %v464 = vshrl.u32 %v463, 7
    %v465 = vsub.s32 %v462, %v464
    %v466 = vrot.slane %v52, %v465
    %v468 = vunpack.c.l.s4 1983009808
    %v469 = vunpack.c.0.s8 %v468
    %v470 = vlaneseq
    %v471 = vshrl.u32 %v470, 7
    %v472 = vsub.s32 %v469, %v471
    %v473 = vrot.slane %v459, %v472
    %v474 = vcombine.high %v466, %v466
    %v475 = vcombine.high %v473, %v473
    %v476 = vcombine.high %v53, %v53
    %v478 = vunpack.c.l.s4 1983009808
    %v479 = vunpack.c.0.s8 %v478
    %v480 = vlaneseq
    %v481 = vshrl.u32 %v480, 7
    %v482 = vsub.s32 %v479, %v481
    %v483 = vrot.slane %v53, %v482
    %v485 = vunpack.c.l.s4 1983009808
    %v486 = vunpack.c.0.s8 %v485
    %v487 = vlaneseq
    %v488 = vshrl.u32 %v487, 7
    %v489 = vsub.s32 %v486, %v488
    %v490 = vrot.slane %v476, %v489
    %v491 = vcombine.high %v483, %v483
    %v492 = vcombine.high %v490, %v490
    %v493 = vcombine.high %v54, %v54
    %v495 = vunpack.c.l.s4 1983009808
    %v496 = vunpack.c.0.s8 %v495
    %v497 = vlaneseq
    %v498 = vshrl.u32 %v497, 7
    %v499 = vsub.s32 %v496, %v498
    %v500 = vrot.slane %v54, %v499
    %v502 = vunpack.c.l.s4 1983009808
    %v503 = vunpack.c.0.s8 %v502
    %v504 = vlaneseq
    %v505 = vshrl.u32 %v504, 7
    %v506 = vsub.s32 %v503, %v505
    %v507 = vrot.slane %v493, %v506
    %v508 = vcombine.high %v500, %v500
    %v509 = vcombine.high %v507, %v507
    %v510 = vcombine.high %v55, %v55
    %v512 = vunpack.c.l.s4 1983009808
    %v513 = vunpack.c.0.s8 %v512
    %v514 = vlaneseq
    %v515 = vshrl.u32 %v514, 7
    %v516 = vsub.s32 %v513, %v515
    %v517 = vrot.slane %v55, %v516
    %v519 = vunpack.c.l.s4 1983009808
    %v520 = vunpack.c.0.s8 %v519
    %v521 = vlaneseq
    %v522 = vshrl.u32 %v521, 7
    %v523 = vsub.s32 %v520, %v522
    %v524 = vrot.slane %v510, %v523
    %v525 = vcombine.high %v517, %v517
    %v526 = vcombine.high %v524, %v524
    %v527 = vcombine.high %v56, %v56
    %v529 = vunpack.c.l.s4 1983009808
    %v530 = vunpack.c.0.s8 %v529
    %v531 = vlaneseq
    %v532 = vshrl.u32 %v531, 7
    %v533 = vsub.s32 %v530, %v532
    %v534 = vrot.slane %v56, %v533
    %v536 = vunpack.c.l.s4 1983009808
    %v537 = vunpack.c.0.s8 %v536
    %v538 = vlaneseq
    %v539 = vshrl.u32 %v538, 7
    %v540 = vsub.s32 %v537, %v539
    %v541 = vrot.slane %v527, %v540
    %v542 = vcombine.high %v534, %v534
    %v543 = vcombine.high %v541, %v541
    %v544 = vcombine.high %v57, %v57
    %v546 = vunpack.c.l.s4 1983009808
    %v547 = vunpack.c.0.s8 %v546
    %v548 = vlaneseq
    %v549 = vshrl.u32 %v548, 7
    %v550 = vsub.s32 %v547, %v549
    %v551 = vrot.slane %v57, %v550
    %v553 = vunpack.c.l.s4 1983009808
    %v554 = vunpack.c.0.s8 %v553
    %v555 = vlaneseq
    %v556 = vshrl.u32 %v555, 7
    %v557 = vsub.s32 %v554, %v556
    %v558 = vrot.slane %v544, %v557
    %v559 = vcombine.high %v551, %v551
    %v560 = vcombine.high %v558, %v558
    %v561 = vcombine.high %v58, %v58
    %v563 = vunpack.c.l.s4 1983009808
    %v564 = vunpack.c.0.s8 %v563
    %v565 = vlaneseq
    %v566 = vshrl.u32 %v565, 7
    %v567 = vsub.s32 %v564, %v566
    %v568 = vrot.slane %v58, %v567
    %v570 = vunpack.c.l.s4 1983009808
    %v571 = vunpack.c.0.s8 %v570
    %v572 = vlaneseq
    %v573 = vshrl.u32 %v572, 7
    %v574 = vsub.s32 %v571, %v573
    %v575 = vrot.slane %v561, %v574
    %v576 = vcombine.high %v568, %v568
    %v577 = vcombine.high %v575, %v575
    %v578 = vcombine.high %v59, %v59
    %v580 = vunpack.c.l.s4 1983009808
    %v581 = vunpack.c.0.s8 %v580
    %v582 = vlaneseq
    %v583 = vshrl.u32 %v582, 7
    %v584 = vsub.s32 %v581, %v583
    %v585 = vrot.slane %v59, %v584
    %v587 = vunpack.c.l.s4 1983009808
    %v588 = vunpack.c.0.s8 %v587
    %v589 = vlaneseq
    %v590 = vshrl.u32 %v589, 7
    %v591 = vsub.s32 %v588, %v590
    %v592 = vrot.slane %v578, %v591
    %v593 = vcombine.high %v585, %v585
    %v594 = vcombine.high %v592, %v592
    %627 = vmatprep.subr.mxu0 %v61
    %628 = vmatpush1.xpose.msra.mxu0 %v60
    %629 = vmatprep.subr.mxu0 %v93
    %630 = vmatpush1.xpose.msra.mxu0 %v92
    %631 = vmatprep.subr.mxu0 %v125
    %632 = vmatpush1.xpose.msra.mxu0 %v124
    %633 = vmatprep.subr.mxu0 %v157
    %634 = vmatpush1.xpose.msra.mxu0 %v156
    %635 = vmatprep.subr.mxu0 %v189
    %636 = vmatpush1.xpose.msra.mxu0 %v188
    %637 = vmatprep.subr.mxu0 %v221
    %638 = vmatpush1.xpose.msra.mxu0 %v220
    %639 = vmatprep.subr.mxu0 %v253
    %640 = vmatpush1.xpose.msra.mxu0 %v252
    %641 = vmatprep.subr.mxu0 %v285
    %642 = vmatpush1.xpose.msra.mxu0 %v284
    %643 = vmatprep.subr.mxu0 %v317
    %644 = vmatpush1.xpose.msra.mxu0 %v316
    %645 = vmatprep.subr.mxu0 %v349
    %646 = vmatpush1.xpose.msra.mxu0 %v348
    %647 = vmatprep.subr.mxu0 %v381
    %648 = vmatpush1.xpose.msra.mxu0 %v380
    %649 = vmatprep.subr.mxu0 %v413
    %650 = vmatpush1.xpose.msra.mxu0 %v412
    %651 = vmatprep.subr.mxu0 0.0
    %652 = vmatpush1.xpose.msra.mxu0 0.0
    %653 = vmatprep.subr.mxu0 0.0
    %654 = vmatpush1.xpose.msra.mxu0 0.0
    %655 = vmatprep.subr.mxu0 0.0
    %656 = vmatpush1.xpose.msra.mxu0 0.0
    %657 = vmatprep.subr.mxu0 0.0
    %658 = vmatpush1.xpose.msra.mxu0 0.0
    %659 = vmatprep.subr.mxu0 0.0
    %660 = vmatpush1.xpose.msra.mxu0 0.0
    %661 = vmatprep.subr.mxu0 0.0
    %662 = vmatpush1.xpose.msra.mxu0 0.0
    %663 = vmatprep.subr.mxu0 0.0
    %664 = vmatpush1.xpose.msra.mxu0 0.0
    %665 = vmatprep.subr.mxu0 0.0
    %666 = vmatpush1.xpose.msra.mxu0 0.0
    %667 = vmatprep.subr.mxu0 0.0
    %668 = vmatpush1.xpose.msra.mxu0 0.0
    %669 = vmatprep.subr.mxu0 0.0
    %670 = vmatpush1.xpose.msra.mxu0 0.0
    %671 = vmatprep.subr.mxu0 0.0
    %672 = vmatpush1.xpose.msra.mxu0 0.0
    %673 = vmatprep.subr.mxu0 0.0
    %674 = vmatpush1.xpose.msra.mxu0 0.0
    %675 = vmatprep.subr.mxu0 0.0
    %676 = vmatpush1.xpose.msra.mxu0 0.0
    %677 = vmatprep.subr.mxu0 0.0
    %678 = vmatpush1.xpose.msra.mxu0 0.0
    %679 = vmatprep.subr.mxu0 0.0
    %680 = vmatpush1.xpose.msra.mxu0 0.0
    %681 = vmatprep.subr.mxu0 0.0
    %682 = vmatpush1.xpose.msra.mxu0 0.0
    %683 = vmatprep.subr.mxu0 0.0
    %684 = vmatpush1.xpose.msra.mxu0 0.0
    %685 = vmatprep.subr.mxu0 0.0
    %686 = vmatpush1.xpose.msra.mxu0 0.0
    %687 = vmatprep.subr.mxu0 0.0
    %688 = vmatpush1.xpose.msra.mxu0 0.0
    %689 = vmatprep.subr.mxu0 0.0
    %690 = vmatpush1.xpose.msra.mxu0 0.0
    %691 = vmatprep.mubr.f32.mxu0 %v474
    %692 = vmatmul.mubr.f32.gmra.mrb[0].mxu0 %v466
    %v693 = vpop.f32.mrb[0].mxu0
    %v694 = vadd.f32 %v449, %v693
    %v695 = vpop.f32.mrb[0].mxu0
    %696 = vdwg.mxu0
    %697 = vmatprep.subr.mxu0 %v63
    %698 = vmatpush1.xpose.msra.mxu0 %v62
    %699 = vmatprep.subr.mxu0 %v95
    %700 = vmatpush1.xpose.msra.mxu0 %v94
    %701 = vmatprep.subr.mxu0 %v127
    %702 = vmatpush1.xpose.msra.mxu0 %v126
    %703 = vmatprep.subr.mxu0 %v159
    %704 = vmatpush1.xpose.msra.mxu0 %v158
    %705 = vmatprep.subr.mxu0 %v191
    %706 = vmatpush1.xpose.msra.mxu0 %v190
    %707 = vmatprep.subr.mxu0 %v223
    %708 = vmatpush1.xpose.msra.mxu0 %v222
    %709 = vmatprep.subr.mxu0 %v255
    %710 = vmatpush1.xpose.msra.mxu0 %v254
    %711 = vmatprep.subr.mxu0 %v287
    %712 = vmatpush1.xpose.msra.mxu0 %v286
    %713 = vmatprep.subr.mxu0 %v319
    %714 = vmatpush1.xpose.msra.mxu0 %v318
    %715 = vmatprep.subr.mxu0 %v351
    %716 = vmatpush1.xpose.msra.mxu0 %v350
    %717 = vmatprep.subr.mxu0 %v383
    %718 = vmatpush1.xpose.msra.mxu0 %v382
    %719 = vmatprep.subr.mxu0 %v415
    %720 = vmatpush1.xpose.msra.mxu0 %v414
    %721 = vmatprep.subr.mxu0 0.0
    %722 = vmatpush1.xpose.msra.mxu0 0.0
    %723 = vmatprep.subr.mxu0 0.0
    %724 = vmatpush1.xpose.msra.mxu0 0.0
    %725 = vmatprep.subr.mxu0 0.0
    %726 = vmatpush1.xpose.msra.mxu0 0.0
    %727 = vmatprep.subr.mxu0 0.0
    %728 = vmatpush1.xpose.msra.mxu0 0.0
    %729 = vmatprep.subr.mxu0 0.0
    %730 = vmatpush1.xpose.msra.mxu0 0.0
    %731 = vmatprep.subr.mxu0 0.0
    %732 = vmatpush1.xpose.msra.mxu0 0.0
    %733 = vmatprep.subr.mxu0 0.0
    %734 = vmatpush1.xpose.msra.mxu0 0.0
    %735 = vmatprep.subr.mxu0 0.0
    %736 = vmatpush1.xpose.msra.mxu0 0.0
    %737 = vmatprep.subr.mxu0 0.0
    %738 = vmatpush1.xpose.msra.mxu0 0.0
    %739 = vmatprep.subr.mxu0 0.0
    %740 = vmatpush1.xpose.msra.mxu0 0.0
    %741 = vmatprep.subr.mxu0 0.0
    %742 = vmatpush1.xpose.msra.mxu0 0.0
    %743 = vmatprep.subr.mxu0 0.0
    %744 = vmatpush1.xpose.msra.mxu0 0.0
    %745 = vmatprep.subr.mxu0 0.0
    %746 = vmatpush1.xpose.msra.mxu0 0.0
    %747 = vmatprep.subr.mxu0 0.0
    %748 = vmatpush1.xpose.msra.mxu0 0.0
    %749 = vmatprep.subr.mxu0 0.0
    %750 = vmatpush1.xpose.msra.mxu0 0.0
    %751 = vmatprep.subr.mxu0 0.0
    %752 = vmatpush1.xpose.msra.mxu0 0.0
    %753 = vmatprep.subr.mxu0 0.0
    %754 = vmatpush1.xpose.msra.mxu0 0.0
    %755 = vmatprep.subr.mxu0 0.0
    %756 = vmatpush1.xpose.msra.mxu0 0.0
    %757 = vmatprep.subr.mxu0 0.0
    %758 = vmatpush1.xpose.msra.mxu0 0.0
    %759 = vmatprep.subr.mxu0 0.0
    %760 = vmatpush1.xpose.msra.mxu0 0.0
    %761 = vmatprep.mubr.f32.mxu0 %v475
    %762 = vmatmul.mubr.f32.gmra.mrb[0].mxu0 %v473
    %v763 = vpop.f32.mrb[0].mxu0
    %v764 = vadd.f32 %v694, %v763
    %v765 = vpop.f32.mrb[0].mxu0
    %766 = vdwg.mxu0
    %767 = vmatprep.subr.mxu0 %v65
    %768 = vmatpush1.xpose.msra.mxu0 %v64
    %769 = vmatprep.subr.mxu0 %v97
    %770 = vmatpush1.xpose.msra.mxu0 %v96
    %771 = vmatprep.subr.mxu0 %v129
    %772 = vmatpush1.xpose.msra.mxu0 %v128
    %773 = vmatprep.subr.mxu0 %v161
    %774 = vmatpush1.xpose.msra.mxu0 %v160
    %775 = vmatprep.subr.mxu0 %v193
    %776 = vmatpush1.xpose.msra.mxu0 %v192
    %777 = vmatprep.subr.mxu0 %v225
    %778 = vmatpush1.xpose.msra.mxu0 %v224
    %779 = vmatprep.subr.mxu0 %v257
    %780 = vmatpush1.xpose.msra.mxu0 %v256
    %781 = vmatprep.subr.mxu0 %v289
    %782 = vmatpush1.xpose.msra.mxu0 %v288
    %783 = vmatprep.subr.mxu0 %v321
    %784 = vmatpush1.xpose.msra.mxu0 %v320
    %785 = vmatprep.subr.mxu0 %v353
    %786 = vmatpush1.xpose.msra.mxu0 %v352
    %787 = vmatprep.subr.mxu0 %v385
    %788 = vmatpush1.xpose.msra.mxu0 %v384
    %789 = vmatprep.subr.mxu0 %v417
    %790 = vmatpush1.xpose.msra.mxu0 %v416
    %791 = vmatprep.subr.mxu0 0.0
    %792 = vmatpush1.xpose.msra.mxu0 0.0
    %793 = vmatprep.subr.mxu0 0.0
    %794 = vmatpush1.xpose.msra.mxu0 0.0
    %795 = vmatprep.subr.mxu0 0.0
    %796 = vmatpush1.xpose.msra.mxu0 0.0
    %797 = vmatprep.subr.mxu0 0.0
    %798 = vmatpush1.xpose.msra.mxu0 0.0
    %799 = vmatprep.subr.mxu0 0.0
    %800 = vmatpush1.xpose.msra.mxu0 0.0
    %801 = vmatprep.subr.mxu0 0.0
    %802 = vmatpush1.xpose.msra.mxu0 0.0
    %803 = vmatprep.subr.mxu0 0.0
    %804 = vmatpush1.xpose.msra.mxu0 0.0
    %805 = vmatprep.subr.mxu0 0.0
    %806 = vmatpush1.xpose.msra.mxu0 0.0
    %807 = vmatprep.subr.mxu0 0.0
    %808 = vmatpush1.xpose.msra.mxu0 0.0
    %809 = vmatprep.subr.mxu0 0.0
    %810 = vmatpush1.xpose.msra.mxu0 0.0
    %811 = vmatprep.subr.mxu0 0.0
    %812 = vmatpush1.xpose.msra.mxu0 0.0
    %813 = vmatprep.subr.mxu0 0.0
    %814 = vmatpush1.xpose.msra.mxu0 0.0
    %815 = vmatprep.subr.mxu0 0.0
    %816 = vmatpush1.xpose.msra.mxu0 0.0
    %817 = vmatprep.subr.mxu0 0.0
    %818 = vmatpush1.xpose.msra.mxu0 0.0
    %819 = vmatprep.subr.mxu0 0.0
    %820 = vmatpush1.xpose.msra.mxu0 0.0
    %821 = vmatprep.subr.mxu0 0.0
    %822 = vmatpush1.xpose.msra.mxu0 0.0
    %823 = vmatprep.subr.mxu0 0.0
    %824 = vmatpush1.xpose.msra.mxu0 0.0
    %825 = vmatprep.subr.mxu0 0.0
    %826 = vmatpush1.xpose.msra.mxu0 0.0
    %827 = vmatprep.subr.mxu0 0.0
    %828 = vmatpush1.xpose.msra.mxu0 0.0
    %829 = vmatprep.subr.mxu0 0.0
    %830 = vmatpush1.xpose.msra.mxu0 0.0
    %831 = vmatprep.mubr.f32.mxu0 %v491
    %832 = vmatmul.mubr.f32.gmra.mrb[0].mxu0 %v483
    %v833 = vpop.f32.mrb[0].mxu0
    %v834 = vadd.f32 %v764, %v833
    %v835 = vpop.f32.mrb[0].mxu0
    %836 = vdwg.mxu0
    %837 = vmatprep.subr.mxu0 %v67
    %838 = vmatpush1.xpose.msra.mxu0 %v66
    %839 = vmatprep.subr.mxu0 %v99
    %840 = vmatpush1.xpose.msra.mxu0 %v98
    %841 = vmatprep.subr.mxu0 %v131
    %842 = vmatpush1.xpose.msra.mxu0 %v130
    %843 = vmatprep.subr.mxu0 %v163
    %844 = vmatpush1.xpose.msra.mxu0 %v162
    %845 = vmatprep.subr.mxu0 %v195
    %846 = vmatpush1.xpose.msra.mxu0 %v194
    %847 = vmatprep.subr.mxu0 %v227
    %848 = vmatpush1.xpose.msra.mxu0 %v226
    %849 = vmatprep.subr.mxu0 %v259
    %850 = vmatpush1.xpose.msra.mxu0 %v258
    %851 = vmatprep.subr.mxu0 %v291
    %852 = vmatpush1.xpose.msra.mxu0 %v290
    %853 = vmatprep.subr.mxu0 %v323
    %854 = vmatpush1.xpose.msra.mxu0 %v322
    %855 = vmatprep.subr.mxu0 %v355
    %856 = vmatpush1.xpose.msra.mxu0 %v354
    %857 = vmatprep.subr.mxu0 %v387
    %858 = vmatpush1.xpose.msra.mxu0 %v386
    %859 = vmatprep.subr.mxu0 %v419
    %860 = vmatpush1.xpose.msra.mxu0 %v418
    %861 = vmatprep.subr.mxu0 0.0
    %862 = vmatpush1.xpose.msra.mxu0 0.0
    %863 = vmatprep.subr.mxu0 0.0
    %864 = vmatpush1.xpose.msra.mxu0 0.0
    %865 = vmatprep.subr.mxu0 0.0
    %866 = vmatpush1.xpose.msra.mxu0 0.0
    %867 = vmatprep.subr.mxu0 0.0
    %868 = vmatpush1.xpose.msra.mxu0 0.0
    %869 = vmatprep.subr.mxu0 0.0
    %870 = vmatpush1.xpose.msra.mxu0 0.0
    %871 = vmatprep.subr.mxu0 0.0
    %872 = vmatpush1.xpose.msra.mxu0 0.0
    %873 = vmatprep.subr.mxu0 0.0
    %874 = vmatpush1.xpose.msra.mxu0 0.0
    %875 = vmatprep.subr.mxu0 0.0
    %876 = vmatpush1.xpose.msra.mxu0 0.0
    %877 = vmatprep.subr.mxu0 0.0
    %878 = vmatpush1.xpose.msra.mxu0 0.0
    %879 = vmatprep.subr.mxu0 0.0
    %880 = vmatpush1.xpose.msra.mxu0 0.0
    %881 = vmatprep.subr.mxu0 0.0
    %882 = vmatpush1.xpose.msra.mxu0 0.0
    %883 = vmatprep.subr.mxu0 0.0
    %884 = vmatpush1.xpose.msra.mxu0 0.0
    %885 = vmatprep.subr.mxu0 0.0
    %886 = vmatpush1.xpose.msra.mxu0 0.0
    %887 = vmatprep.subr.mxu0 0.0
    %888 = vmatpush1.xpose.msra.mxu0 0.0
    %889 = vmatprep.subr.mxu0 0.0
    %890 = vmatpush1.xpose.msra.mxu0 0.0
    %891 = vmatprep.subr.mxu0 0.0
    %892 = vmatpush1.xpose.msra.mxu0 0.0
    %893 = vmatprep.subr.mxu0 0.0
    %894 = vmatpush1.xpose.msra.mxu0 0.0
    %895 = vmatprep.subr.mxu0 0.0
    %896 = vmatpush1.xpose.msra.mxu0 0.0
    %897 = vmatprep.subr.mxu0 0.0
    %898 = vmatpush1.xpose.msra.mxu0 0.0
    %899 = vmatprep.subr.mxu0 0.0
    %900 = vmatpush1.xpose.msra.mxu0 0.0
    %901 = vmatprep.mubr.f32.mxu0 %v492
    %902 = vmatmul.mubr.f32.gmra.mrb[0].mxu0 %v490
    %v903 = vpop.f32.mrb[0].mxu0
    %v904 = vadd.f32 %v834, %v903
    %v905 = vpop.f32.mrb[0].mxu0
    %906 = vdwg.mxu0
    %907 = vmatprep.subr.mxu0 %v69
    %908 = vmatpush1.xpose.msra.mxu0 %v68
    %909 = vmatprep.subr.mxu0 %v101
    %910 = vmatpush1.xpose.msra.mxu0 %v100
    %911 = vmatprep.subr.mxu0 %v133
    %912 = vmatpush1.xpose.msra.mxu0 %v132
    %913 = vmatprep.subr.mxu0 %v165
    %914 = vmatpush1.xpose.msra.mxu0 %v164
    %915 = vmatprep.subr.mxu0 %v197
    %916 = vmatpush1.xpose.msra.mxu0 %v196
    %917 = vmatprep.subr.mxu0 %v229
    %918 = vmatpush1.xpose.msra.mxu0 %v228
    %919 = vmatprep.subr.mxu0 %v261
    %920 = vmatpush1.xpose.msra.mxu0 %v260
    %921 = vmatprep.subr.mxu0 %v293
    %922 = vmatpush1.xpose.msra.mxu0 %v292
    %923 = vmatprep.subr.mxu0 %v325
    %924 = vmatpush1.xpose.msra.mxu0 %v324
    %925 = vmatprep.subr.mxu0 %v357
    %926 = vmatpush1.xpose.msra.mxu0 %v356
    %927 = vmatprep.subr.mxu0 %v389
    %928 = vmatpush1.xpose.msra.mxu0 %v388
    %929 = vmatprep.subr.mxu0 %v421
    %930 = vmatpush1.xpose.msra.mxu0 %v420
    %931 = vmatprep.subr.mxu0 0.0
    %932 = vmatpush1.xpose.msra.mxu0 0.0
    %933 = vmatprep.subr.mxu0 0.0
    %934 = vmatpush1.xpose.msra.mxu0 0.0
    %935 = vmatprep.subr.mxu0 0.0
    %936 = vmatpush1.xpose.msra.mxu0 0.0
    %937 = vmatprep.subr.mxu0 0.0
    %938 = vmatpush1.xpose.msra.mxu0 0.0
    %939 = vmatprep.subr.mxu0 0.0
    %940 = vmatpush1.xpose.msra.mxu0 0.0
    %941 = vmatprep.subr.mxu0 0.0
    %942 = vmatpush1.xpose.msra.mxu0 0.0
    %943 = vmatprep.subr.mxu0 0.0
    %944 = vmatpush1.xpose.msra.mxu0 0.0
    %945 = vmatprep.subr.mxu0 0.0
    %946 = vmatpush1.xpose.msra.mxu0 0.0
    %947 = vmatprep.subr.mxu0 0.0
    %948 = vmatpush1.xpose.msra.mxu0 0.0
    %949 = vmatprep.subr.mxu0 0.0
    %950 = vmatpush1.xpose.msra.mxu0 0.0
    %951 = vmatprep.subr.mxu0 0.0
    %952 = vmatpush1.xpose.msra.mxu0 0.0
    %953 = vmatprep.subr.mxu0 0.0
    %954 = vmatpush1.xpose.msra.mxu0 0.0
    %955 = vmatprep.subr.mxu0 0.0
    %956 = vmatpush1.xpose.msra.mxu0 0.0
    %957 = vmatprep.subr.mxu0 0.0
    %958 = vmatpush1.xpose.msra.mxu0 0.0
    %959 = vmatprep.subr.mxu0 0.0
    %960 = vmatpush1.xpose.msra.mxu0 0.0
    %961 = vmatprep.subr.mxu0 0.0
    %962 = vmatpush1.xpose.msra.mxu0 0.0
    %963 = vmatprep.subr.mxu0 0.0
    %964 = vmatpush1.xpose.msra.mxu0 0.0
    %965 = vmatprep.subr.mxu0 0.0
    %966 = vmatpush1.xpose.msra.mxu0 0.0
    %967 = vmatprep.subr.mxu0 0.0
    %968 = vmatpush1.xpose.msra.mxu0 0.0
    %969 = vmatprep.subr.mxu0 0.0
    %970 = vmatpush1.xpose.msra.mxu0 0.0
    %971 = vmatprep.mubr.f32.mxu0 %v508
    %972 = vmatmul.mubr.f32.gmra.mrb[0].mxu0 %v500
    %v973 = vpop.f32.mrb[0].mxu0
    %v974 = vadd.f32 %v904, %v973
    %v975 = vpop.f32.mrb[0].mxu0
    %976 = vdwg.mxu0
    %977 = vmatprep.subr.mxu0 %v71
    %978 = vmatpush1.xpose.msra.mxu0 %v70
    %979 = vmatprep.subr.mxu0 %v103
    %980 = vmatpush1.xpose.msra.mxu0 %v102
    %981 = vmatprep.subr.mxu0 %v135
    %982 = vmatpush1.xpose.msra.mxu0 %v134
    %983 = vmatprep.subr.mxu0 %v167
    %984 = vmatpush1.xpose.msra.mxu0 %v166
    %985 = vmatprep.subr.mxu0 %v199
    %986 = vmatpush1.xpose.msra.mxu0 %v198
    %987 = vmatprep.subr.mxu0 %v231
    %988 = vmatpush1.xpose.msra.mxu0 %v230
    %989 = vmatprep.subr.mxu0 %v263
    %990 = vmatpush1.xpose.msra.mxu0 %v262
    %991 = vmatprep.subr.mxu0 %v295
    %992 = vmatpush1.xpose.msra.mxu0 %v294
    %993 = vmatprep.subr.mxu0 %v327
    %994 = vmatpush1.xpose.msra.mxu0 %v326
    %995 = vmatprep.subr.mxu0 %v359
    %996 = vmatpush1.xpose.msra.mxu0 %v358
    %997 = vmatprep.subr.mxu0 %v391
    %998 = vmatpush1.xpose.msra.mxu0 %v390
    %999 = vmatprep.subr.mxu0 %v423
    %1000 = vmatpush1.xpose.msra.mxu0 %v422
    %1001 = vmatprep.subr.mxu0 0.0
    %1002 = vmatpush1.xpose.msra.mxu0 0.0
    %1003 = vmatprep.subr.mxu0 0.0
    %1004 = vmatpush1.xpose.msra.mxu0 0.0
    %1005 = vmatprep.subr.mxu0 0.0
    %1006 = vmatpush1.xpose.msra.mxu0 0.0
    %1007 = vmatprep.subr.mxu0 0.0
    %1008 = vmatpush1.xpose.msra.mxu0 0.0
    %1009 = vmatprep.subr.mxu0 0.0
    %1010 = vmatpush1.xpose.msra.mxu0 0.0
    %1011 = vmatprep.subr.mxu0 0.0
    %1012 = vmatpush1.xpose.msra.mxu0 0.0
    %1013 = vmatprep.subr.mxu0 0.0
    %1014 = vmatpush1.xpose.msra.mxu0 0.0
    %1015 = vmatprep.subr.mxu0 0.0
    %1016 = vmatpush1.xpose.msra.mxu0 0.0
    %1017 = vmatprep.subr.mxu0 0.0
    %1018 = vmatpush1.xpose.msra.mxu0 0.0
    %1019 = vmatprep.subr.mxu0 0.0
    %1020 = vmatpush1.xpose.msra.mxu0 0.0
    %1021 = vmatprep.subr.mxu0 0.0
    %1022 = vmatpush1.xpose.msra.mxu0 0.0
    %1023 = vmatprep.subr.mxu0 0.0
    %1024 = vmatpush1.xpose.msra.mxu0 0.0
    %1025 = vmatprep.subr.mxu0 0.0
    %1026 = vmatpush1.xpose.msra.mxu0 0.0
    %1027 = vmatprep.subr.mxu0 0.0
    %1028 = vmatpush1.xpose.msra.mxu0 0.0
    %1029 = vmatprep.subr.mxu0 0.0
    %1030 = vmatpush1.xpose.msra.mxu0 0.0
    %1031 = vmatprep.subr.mxu0 0.0
    %1032 = vmatpush1.xpose.msra.mxu0 0.0
    %1033 = vmatprep.subr.mxu0 0.0
    %1034 = vmatpush1.xpose.msra.mxu0 0.0
    %1035 = vmatprep.subr.mxu0 0.0
    %1036 = vmatpush1.xpose.msra.mxu0 0.0
    %1037 = vmatprep.subr.mxu0 0.0
    %1038 = vmatpush1.xpose.msra.mxu0 0.0
    %1039 = vmatprep.subr.mxu0 0.0
    %1040 = vmatpush1.xpose.msra.mxu0 0.0
    %1041 = vmatprep.mubr.f32.mxu0 %v509
    %1042 = vmatmul.mubr.f32.gmra.mrb[0].mxu0 %v507
    %v1043 = vpop.f32.mrb[0].mxu0
    %v1044 = vadd.f32 %v974, %v1043
    %v1045 = vpop.f32.mrb[0].mxu0
    %1046 = vdwg.mxu0
    %1047 = vmatprep.subr.mxu0 %v73
    %1048 = vmatpush1.xpose.msra.mxu0 %v72
    %1049 = vmatprep.subr.mxu0 %v105
    %1050 = vmatpush1.xpose.msra.mxu0 %v104
    %1051 = vmatprep.subr.mxu0 %v137
    %1052 = vmatpush1.xpose.msra.mxu0 %v136
    %1053 = vmatprep.subr.mxu0 %v169
    %1054 = vmatpush1.xpose.msra.mxu0 %v168
    %1055 = vmatprep.subr.mxu0 %v201
    %1056 = vmatpush1.xpose.msra.mxu0 %v200
    %1057 = vmatprep.subr.mxu0 %v233
    %1058 = vmatpush1.xpose.msra.mxu0 %v232
    %1059 = vmatprep.subr.mxu0 %v265
    %1060 = vmatpush1.xpose.msra.mxu0 %v264
    %1061 = vmatprep.subr.mxu0 %v297
    %1062 = vmatpush1.xpose.msra.mxu0 %v296
    %1063 = vmatprep.subr.mxu0 %v329
    %1064 = vmatpush1.xpose.msra.mxu0 %v328
    %1065 = vmatprep.subr.mxu0 %v361
    %1066 = vmatpush1.xpose.msra.mxu0 %v360
    %1067 = vmatprep.subr.mxu0 %v393
    %1068 = vmatpush1.xpose.msra.mxu0 %v392
    %1069 = vmatprep.subr.mxu0 %v425
    %1070 = vmatpush1.xpose.msra.mxu0 %v424
    %1071 = vmatprep.subr.mxu0 0.0
    %1072 = vmatpush1.xpose.msra.mxu0 0.0
    %1073 = vmatprep.subr.mxu0 0.0
    %1074 = vmatpush1.xpose.msra.mxu0 0.0
    %1075 = vmatprep.subr.mxu0 0.0
    %1076 = vmatpush1.xpose.msra.mxu0 0.0
    %1077 = vmatprep.subr.mxu0 0.0
    %1078 = vmatpush1.xpose.msra.mxu0 0.0
    %1079 = vmatprep.subr.mxu0 0.0
    %1080 = vmatpush1.xpose.msra.mxu0 0.0
    %1081 = vmatprep.subr.mxu0 0.0
    %1082 = vmatpush1.xpose.msra.mxu0 0.0
    %1083 = vmatprep.subr.mxu0 0.0
    %1084 = vmatpush1.xpose.msra.mxu0 0.0
    %1085 = vmatprep.subr.mxu0 0.0
    %1086 = vmatpush1.xpose.msra.mxu0 0.0
    %1087 = vmatprep.subr.mxu0 0.0
    %1088 = vmatpush1.xpose.msra.mxu0 0.0
    %1089 = vmatprep.subr.mxu0 0.0
    %1090 = vmatpush1.xpose.msra.mxu0 0.0
    %1091 = vmatprep.subr.mxu0 0.0
    %1092 = vmatpush1.xpose.msra.mxu0 0.0
    %1093 = vmatprep.subr.mxu0 0.0
    %1094 = vmatpush1.xpose.msra.mxu0 0.0
    %1095 = vmatprep.subr.mxu0 0.0
    %1096 = vmatpush1.xpose.msra.mxu0 0.0
    %1097 = vmatprep.subr.mxu0 0.0
    %1098 = vmatpush1.xpose.msra.mxu0 0.0
    %1099 = vmatprep.subr.mxu0 0.0
    %1100 = vmatpush1.xpose.msra.mxu0 0.0
    %1101 = vmatprep.subr.mxu0 0.0
    %1102 = vmatpush1.xpose.msra.mxu0 0.0
    %1103 = vmatprep.subr.mxu0 0.0
    %1104 = vmatpush1.xpose.msra.mxu0 0.0
    %1105 = vmatprep.subr.mxu0 0.0
    %1106 = vmatpush1.xpose.msra.mxu0 0.0
    %1107 = vmatprep.subr.mxu0 0.0
    %1108 = vmatpush1.xpose.msra.mxu0 0.0
    %1109 = vmatprep.subr.mxu0 0.0
    %1110 = vmatpush1.xpose.msra.mxu0 0.0
    %1111 = vmatprep.mubr.f32.mxu0 %v525
    %1112 = vmatmul.mubr.f32.gmra.mrb[0].mxu0 %v517
    %v1113 = vpop.f32.mrb[0].mxu0
    %v1114 = vadd.f32 %v1044, %v1113
    %v1115 = vpop.f32.mrb[0].mxu0
    %1116 = vdwg.mxu0
    %1117 = vmatprep.subr.mxu0 %v75
    %1118 = vmatpush1.xpose.msra.mxu0 %v74
    %1119 = vmatprep.subr.mxu0 %v107
    %1120 = vmatpush1.xpose.msra.mxu0 %v106
    %1121 = vmatprep.subr.mxu0 %v139
    %1122 = vmatpush1.xpose.msra.mxu0 %v138
    %1123 = vmatprep.subr.mxu0 %v171
    %1124 = vmatpush1.xpose.msra.mxu0 %v170
    %1125 = vmatprep.subr.mxu0 %v203
    %1126 = vmatpush1.xpose.msra.mxu0 %v202
    %1127 = vmatprep.subr.mxu0 %v235
    %1128 = vmatpush1.xpose.msra.mxu0 %v234
    %1129 = vmatprep.subr.mxu0 %v267
    %1130 = vmatpush1.xpose.msra.mxu0 %v266
    %1131 = vmatprep.subr.mxu0 %v299
    %1132 = vmatpush1.xpose.msra.mxu0 %v298
    %1133 = vmatprep.subr.mxu0 %v331
    %1134 = vmatpush1.xpose.msra.mxu0 %v330
    %1135 = vmatprep.subr.mxu0 %v363
    %1136 = vmatpush1.xpose.msra.mxu0 %v362
    %1137 = vmatprep.subr.mxu0 %v395
    %1138 = vmatpush1.xpose.msra.mxu0 %v394
    %1139 = vmatprep.subr.mxu0 %v427
    %1140 = vmatpush1.xpose.msra.mxu0 %v426
    %1141 = vmatprep.subr.mxu0 0.0
    %1142 = vmatpush1.xpose.msra.mxu0 0.0
    %1143 = vmatprep.subr.mxu0 0.0
    %1144 = vmatpush1.xpose.msra.mxu0 0.0
    %1145 = vmatprep.subr.mxu0 0.0
    %1146 = vmatpush1.xpose.msra.mxu0 0.0
    %1147 = vmatprep.subr.mxu0 0.0
    %1148 = vmatpush1.xpose.msra.mxu0 0.0
    %1149 = vmatprep.subr.mxu0 0.0
    %1150 = vmatpush1.xpose.msra.mxu0 0.0
    %1151 = vmatprep.subr.mxu0 0.0
    %1152 = vmatpush1.xpose.msra.mxu0 0.0
    %1153 = vmatprep.subr.mxu0 0.0
    %1154 = vmatpush1.xpose.msra.mxu0 0.0
    %1155 = vmatprep.subr.mxu0 0.0
    %1156 = vmatpush1.xpose.msra.mxu0 0.0
    %1157 = vmatprep.subr.mxu0 0.0
    %1158 = vmatpush1.xpose.msra.mxu0 0.0
    %1159 = vmatprep.subr.mxu0 0.0
    %1160 = vmatpush1.xpose.msra.mxu0 0.0
    %1161 = vmatprep.subr.mxu0 0.0
    %1162 = vmatpush1.xpose.msra.mxu0 0.0
    %1163 = vmatprep.subr.mxu0 0.0
    %1164 = vmatpush1.xpose.msra.mxu0 0.0
    %1165 = vmatprep.subr.mxu0 0.0
    %1166 = vmatpush1.xpose.msra.mxu0 0.0
    %1167 = vmatprep.subr.mxu0 0.0
    %1168 = vmatpush1.xpose.msra.mxu0 0.0
    %1169 = vmatprep.subr.mxu0 0.0
    %1170 = vmatpush1.xpose.msra.mxu0 0.0
    %1171 = vmatprep.subr.mxu0 0.0
    %1172 = vmatpush1.xpose.msra.mxu0 0.0
    %1173 = vmatprep.subr.mxu0 0.0
    %1174 = vmatpush1.xpose.msra.mxu0 0.0
    %1175 = vmatprep.subr.mxu0 0.0
    %1176 = vmatpush1.xpose.msra.mxu0 0.0
    %1177 = vmatprep.subr.mxu0 0.0
    %1178 = vmatpush1.xpose.msra.mxu0 0.0
    %1179 = vmatprep.subr.mxu0 0.0
    %1180 = vmatpush1.xpose.msra.mxu0 0.0
    %1181 = vmatprep.mubr.f32.mxu0 %v526
    %1182 = vmatmul.mubr.f32.gmra.mrb[0].mxu0 %v524
    %v1183 = vpop.f32.mrb[0].mxu0
    %v1184 = vadd.f32 %v1114, %v1183
    %v1185 = vpop.f32.mrb[0].mxu0
    %1186 = vdwg.mxu0
    %1187 = vmatprep.subr.mxu0 %v77
    %1188 = vmatpush1.xpose.msra.mxu0 %v76
    %1189 = vmatprep.subr.mxu0 %v109
    %1190 = vmatpush1.xpose.msra.mxu0 %v108
    %1191 = vmatprep.subr.mxu0 %v141
    %1192 = vmatpush1.xpose.msra.mxu0 %v140
    %1193 = vmatprep.subr.mxu0 %v173
    %1194 = vmatpush1.xpose.msra.mxu0 %v172
    %1195 = vmatprep.subr.mxu0 %v205
    %1196 = vmatpush1.xpose.msra.mxu0 %v204
    %1197 = vmatprep.subr.mxu0 %v237
    %1198 = vmatpush1.xpose.msra.mxu0 %v236
    %1199 = vmatprep.subr.mxu0 %v269
    %1200 = vmatpush1.xpose.msra.mxu0 %v268
    %1201 = vmatprep.subr.mxu0 %v301
    %1202 = vmatpush1.xpose.msra.mxu0 %v300
    %1203 = vmatprep.subr.mxu0 %v333
    %1204 = vmatpush1.xpose.msra.mxu0 %v332
    %1205 = vmatprep.subr.mxu0 %v365
    %1206 = vmatpush1.xpose.msra.mxu0 %v364
    %1207 = vmatprep.subr.mxu0 %v397
    %1208 = vmatpush1.xpose.msra.mxu0 %v396
    %1209 = vmatprep.subr.mxu0 %v429
    %1210 = vmatpush1.xpose.msra.mxu0 %v428
    %1211 = vmatprep.subr.mxu0 0.0
    %1212 = vmatpush1.xpose.msra.mxu0 0.0
    %1213 = vmatprep.subr.mxu0 0.0
    %1214 = vmatpush1.xpose.msra.mxu0 0.0
    %1215 = vmatprep.subr.mxu0 0.0
    %1216 = vmatpush1.xpose.msra.mxu0 0.0
    %1217 = vmatprep.subr.mxu0 0.0
    %1218 = vmatpush1.xpose.msra.mxu0 0.0
    %1219 = vmatprep.subr.mxu0 0.0
    %1220 = vmatpush1.xpose.msra.mxu0 0.0
    %1221 = vmatprep.subr.mxu0 0.0
    %1222 = vmatpush1.xpose.msra.mxu0 0.0
    %1223 = vmatprep.subr.mxu0 0.0
    %1224 = vmatpush1.xpose.msra.mxu0 0.0
    %1225 = vmatprep.subr.mxu0 0.0
    %1226 = vmatpush1.xpose.msra.mxu0 0.0
    %1227 = vmatprep.subr.mxu0 0.0
    %1228 = vmatpush1.xpose.msra.mxu0 0.0
    %1229 = vmatprep.subr.mxu0 0.0
    %1230 = vmatpush1.xpose.msra.mxu0 0.0
    %1231 = vmatprep.subr.mxu0 0.0
    %1232 = vmatpush1.xpose.msra.mxu0 0.0
    %1233 = vmatprep.subr.mxu0 0.0
    %1234 = vmatpush1.xpose.msra.mxu0 0.0
    %1235 = vmatprep.subr.mxu0 0.0
    %1236 = vmatpush1.xpose.msra.mxu0 0.0
    %1237 = vmatprep.subr.mxu0 0.0
    %1238 = vmatpush1.xpose.msra.mxu0 0.0
    %1239 = vmatprep.subr.mxu0 0.0
    %1240 = vmatpush1.xpose.msra.mxu0 0.0
    %1241 = vmatprep.subr.mxu0 0.0
    %1242 = vmatpush1.xpose.msra.mxu0 0.0
    %1243 = vmatprep.subr.mxu0 0.0
    %1244 = vmatpush1.xpose.msra.mxu0 0.0
    %1245 = vmatprep.subr.mxu0 0.0
    %1246 = vmatpush1.xpose.msra.mxu0 0.0
    %1247 = vmatprep.subr.mxu0 0.0
    %1248 = vmatpush1.xpose.msra.mxu0 0.0
    %1249 = vmatprep.subr.mxu0 0.0
    %1250 = vmatpush1.xpose.msra.mxu0 0.0
    %1251 = vmatprep.mubr.f32.mxu0 %v542
    %1252 = vmatmul.mubr.f32.gmra.mrb[0].mxu0 %v534
    %v1253 = vpop.f32.mrb[0].mxu0
    %v1254 = vadd.f32 %v1184, %v1253
    %v1255 = vpop.f32.mrb[0].mxu0
    %1256 = vdwg.mxu0
    %1257 = vmatprep.subr.mxu0 %v79
    %1258 = vmatpush1.xpose.msra.mxu0 %v78
    %1259 = vmatprep.subr.mxu0 %v111
    %1260 = vmatpush1.xpose.msra.mxu0 %v110
    %1261 = vmatprep.subr.mxu0 %v143
    %1262 = vmatpush1.xpose.msra.mxu0 %v142
    %1263 = vmatprep.subr.mxu0 %v175
    %1264 = vmatpush1.xpose.msra.mxu0 %v174
    %1265 = vmatprep.subr.mxu0 %v207
    %1266 = vmatpush1.xpose.msra.mxu0 %v206
    %1267 = vmatprep.subr.mxu0 %v239
    %1268 = vmatpush1.xpose.msra.mxu0 %v238
    %1269 = vmatprep.subr.mxu0 %v271
    %1270 = vmatpush1.xpose.msra.mxu0 %v270
    %1271 = vmatprep.subr.mxu0 %v303
    %1272 = vmatpush1.xpose.msra.mxu0 %v302
    %1273 = vmatprep.subr.mxu0 %v335
    %1274 = vmatpush1.xpose.msra.mxu0 %v334
    %1275 = vmatprep.subr.mxu0 %v367
    %1276 = vmatpush1.xpose.msra.mxu0 %v366
    %1277 = vmatprep.subr.mxu0 %v399
    %1278 = vmatpush1.xpose.msra.mxu0 %v398
    %1279 = vmatprep.subr.mxu0 %v431
    %1280 = vmatpush1.xpose.msra.mxu0 %v430
    %1281 = vmatprep.subr.mxu0 0.0
    %1282 = vmatpush1.xpose.msra.mxu0 0.0
    %1283 = vmatprep.subr.mxu0 0.0
    %1284 = vmatpush1.xpose.msra.mxu0 0.0
    %1285 = vmatprep.subr.mxu0 0.0
    %1286 = vmatpush1.xpose.msra.mxu0 0.0
    %1287 = vmatprep.subr.mxu0 0.0
    %1288 = vmatpush1.xpose.msra.mxu0 0.0
    %1289 = vmatprep.subr.mxu0 0.0
    %1290 = vmatpush1.xpose.msra.mxu0 0.0
    %1291 = vmatprep.subr.mxu0 0.0
    %1292 = vmatpush1.xpose.msra.mxu0 0.0
    %1293 = vmatprep.subr.mxu0 0.0
    %1294 = vmatpush1.xpose.msra.mxu0 0.0
    %1295 = vmatprep.subr.mxu0 0.0
    %1296 = vmatpush1.xpose.msra.mxu0 0.0
    %1297 = vmatprep.subr.mxu0 0.0
    %1298 = vmatpush1.xpose.msra.mxu0 0.0
    %1299 = vmatprep.subr.mxu0 0.0
    %1300 = vmatpush1.xpose.msra.mxu0 0.0
    %1301 = vmatprep.subr.mxu0 0.0
    %1302 = vmatpush1.xpose.msra.mxu0 0.0
    %1303 = vmatprep.subr.mxu0 0.0
    %1304 = vmatpush1.xpose.msra.mxu0 0.0
    %1305 = vmatprep.subr.mxu0 0.0
    %1306 = vmatpush1.xpose.msra.mxu0 0.0
    %1307 = vmatprep.subr.mxu0 0.0
    %1308 = vmatpush1.xpose.msra.mxu0 0.0
    %1309 = vmatprep.subr.mxu0 0.0
    %1310 = vmatpush1.xpose.msra.mxu0 0.0
    %1311 = vmatprep.subr.mxu0 0.0
    %1312 = vmatpush1.xpose.msra.mxu0 0.0
    %1313 = vmatprep.subr.mxu0 0.0
    %1314 = vmatpush1.xpose.msra.mxu0 0.0
    %1315 = vmatprep.subr.mxu0 0.0
    %1316 = vmatpush1.xpose.msra.mxu0 0.0
    %1317 = vmatprep.subr.mxu0 0.0
    %1318 = vmatpush1.xpose.msra.mxu0 0.0
    %1319 = vmatprep.subr.mxu0 0.0
    %1320 = vmatpush1.xpose.msra.mxu0 0.0
    %1321 = vmatprep.mubr.f32.mxu0 %v543
    %1322 = vmatmul.mubr.f32.gmra.mrb[0].mxu0 %v541
    %v1323 = vpop.f32.mrb[0].mxu0
    %v1324 = vadd.f32 %v1254, %v1323
    %v1325 = vpop.f32.mrb[0].mxu0
    %1326 = vdwg.mxu0
    %1327 = vmatprep.subr.mxu0 %v81
    %1328 = vmatpush1.xpose.msra.mxu0 %v80
    %1329 = vmatprep.subr.mxu0 %v113
    %1330 = vmatpush1.xpose.msra.mxu0 %v112
    %1331 = vmatprep.subr.mxu0 %v145
    %1332 = vmatpush1.xpose.msra.mxu0 %v144
    %1333 = vmatprep.subr.mxu0 %v177
    %1334 = vmatpush1.xpose.msra.mxu0 %v176
    %1335 = vmatprep.subr.mxu0 %v209
    %1336 = vmatpush1.xpose.msra.mxu0 %v208
    %1337 = vmatprep.subr.mxu0 %v241
    %1338 = vmatpush1.xpose.msra.mxu0 %v240
    %1339 = vmatprep.subr.mxu0 %v273
    %1340 = vmatpush1.xpose.msra.mxu0 %v272
    %1341 = vmatprep.subr.mxu0 %v305
    %1342 = vmatpush1.xpose.msra.mxu0 %v304
    %1343 = vmatprep.subr.mxu0 %v337
    %1344 = vmatpush1.xpose.msra.mxu0 %v336
    %1345 = vmatprep.subr.mxu0 %v369
    %1346 = vmatpush1.xpose.msra.mxu0 %v368
    %1347 = vmatprep.subr.mxu0 %v401
    %1348 = vmatpush1.xpose.msra.mxu0 %v400
    %1349 = vmatprep.subr.mxu0 %v433
    %1350 = vmatpush1.xpose.msra.mxu0 %v432
    %1351 = vmatprep.subr.mxu0 0.0
    %1352 = vmatpush1.xpose.msra.mxu0 0.0
    %1353 = vmatprep.subr.mxu0 0.0
    %1354 = vmatpush1.xpose.msra.mxu0 0.0
    %1355 = vmatprep.subr.mxu0 0.0
    %1356 = vmatpush1.xpose.msra.mxu0 0.0
    %1357 = vmatprep.subr.mxu0 0.0
    %1358 = vmatpush1.xpose.msra.mxu0 0.0
    %1359 = vmatprep.subr.mxu0 0.0
    %1360 = vmatpush1.xpose.msra.mxu0 0.0
    %1361 = vmatprep.subr.mxu0 0.0
    %1362 = vmatpush1.xpose.msra.mxu0 0.0
    %1363 = vmatprep.subr.mxu0 0.0
    %1364 = vmatpush1.xpose.msra.mxu0 0.0
    %1365 = vmatprep.subr.mxu0 0.0
    %1366 = vmatpush1.xpose.msra.mxu0 0.0
    %1367 = vmatprep.subr.mxu0 0.0
    %1368 = vmatpush1.xpose.msra.mxu0 0.0
    %1369 = vmatprep.subr.mxu0 0.0
    %1370 = vmatpush1.xpose.msra.mxu0 0.0
    %1371 = vmatprep.subr.mxu0 0.0
    %1372 = vmatpush1.xpose.msra.mxu0 0.0
    %1373 = vmatprep.subr.mxu0 0.0
    %1374 = vmatpush1.xpose.msra.mxu0 0.0
    %1375 = vmatprep.subr.mxu0 0.0
    %1376 = vmatpush1.xpose.msra.mxu0 0.0
    %1377 = vmatprep.subr.mxu0 0.0
    %1378 = vmatpush1.xpose.msra.mxu0 0.0
    %1379 = vmatprep.subr.mxu0 0.0
    %1380 = vmatpush1.xpose.msra.mxu0 0.0
    %1381 = vmatprep.subr.mxu0 0.0
    %1382 = vmatpush1.xpose.msra.mxu0 0.0
    %1383 = vmatprep.subr.mxu0 0.0
    %1384 = vmatpush1.xpose.msra.mxu0 0.0
    %1385 = vmatprep.subr.mxu0 0.0
    %1386 = vmatpush1.xpose.msra.mxu0 0.0
    %1387 = vmatprep.subr.mxu0 0.0
    %1388 = vmatpush1.xpose.msra.mxu0 0.0
    %1389 = vmatprep.subr.mxu0 0.0
    %1390 = vmatpush1.xpose.msra.mxu0 0.0
    %1391 = vmatprep.mubr.f32.mxu0 %v559
    %1392 = vmatmul.mubr.f32.gmra.mrb[0].mxu0 %v551
    %v1393 = vpop.f32.mrb[0].mxu0
    %v1394 = vadd.f32 %v1324, %v1393
    %v1395 = vpop.f32.mrb[0].mxu0
    %1396 = vdwg.mxu0
    %1397 = vmatprep.subr.mxu0 %v83
    %1398 = vmatpush1.xpose.msra.mxu0 %v82
    %1399 = vmatprep.subr.mxu0 %v115
    %1400 = vmatpush1.xpose.msra.mxu0 %v114
    %1401 = vmatprep.subr.mxu0 %v147
    %1402 = vmatpush1.xpose.msra.mxu0 %v146
    %1403 = vmatprep.subr.mxu0 %v179
    %1404 = vmatpush1.xpose.msra.mxu0 %v178
    %1405 = vmatprep.subr.mxu0 %v211
    %1406 = vmatpush1.xpose.msra.mxu0 %v210
    %1407 = vmatprep.subr.mxu0 %v243
    %1408 = vmatpush1.xpose.msra.mxu0 %v242
    %1409 = vmatprep.subr.mxu0 %v275
    %1410 = vmatpush1.xpose.msra.mxu0 %v274
    %1411 = vmatprep.subr.mxu0 %v307
    %1412 = vmatpush1.xpose.msra.mxu0 %v306
    %1413 = vmatprep.subr.mxu0 %v339
    %1414 = vmatpush1.xpose.msra.mxu0 %v338
    %1415 = vmatprep.subr.mxu0 %v371
    %1416 = vmatpush1.xpose.msra.mxu0 %v370
    %1417 = vmatprep.subr.mxu0 %v403
    %1418 = vmatpush1.xpose.msra.mxu0 %v402
    %1419 = vmatprep.subr.mxu0 %v435
    %1420 = vmatpush1.xpose.msra.mxu0 %v434
    %1421 = vmatprep.subr.mxu0 0.0
    %1422 = vmatpush1.xpose.msra.mxu0 0.0
    %1423 = vmatprep.subr.mxu0 0.0
    %1424 = vmatpush1.xpose.msra.mxu0 0.0
    %1425 = vmatprep.subr.mxu0 0.0
    %1426 = vmatpush1.xpose.msra.mxu0 0.0
    %1427 = vmatprep.subr.mxu0 0.0
    %1428 = vmatpush1.xpose.msra.mxu0 0.0
    %1429 = vmatprep.subr.mxu0 0.0
    %1430 = vmatpush1.xpose.msra.mxu0 0.0
    %1431 = vmatprep.subr.mxu0 0.0
    %1432 = vmatpush1.xpose.msra.mxu0 0.0
    %1433 = vmatprep.subr.mxu0 0.0
    %1434 = vmatpush1.xpose.msra.mxu0 0.0
    %1435 = vmatprep.subr.mxu0 0.0
    %1436 = vmatpush1.xpose.msra.mxu0 0.0
    %1437 = vmatprep.subr.mxu0 0.0
    %1438 = vmatpush1.xpose.msra.mxu0 0.0
    %1439 = vmatprep.subr.mxu0 0.0
    %1440 = vmatpush1.xpose.msra.mxu0 0.0
    %1441 = vmatprep.subr.mxu0 0.0
    %1442 = vmatpush1.xpose.msra.mxu0 0.0
    %1443 = vmatprep.subr.mxu0 0.0
    %1444 = vmatpush1.xpose.msra.mxu0 0.0
    %1445 = vmatprep.subr.mxu0 0.0
    %1446 = vmatpush1.xpose.msra.mxu0 0.0
    %1447 = vmatprep.subr.mxu0 0.0
    %1448 = vmatpush1.xpose.msra.mxu0 0.0
    %1449 = vmatprep.subr.mxu0 0.0
    %1450 = vmatpush1.xpose.msra.mxu0 0.0
    %1451 = vmatprep.subr.mxu0 0.0
    %1452 = vmatpush1.xpose.msra.mxu0 0.0
    %1453 = vmatprep.subr.mxu0 0.0
    %1454 = vmatpush1.xpose.msra.mxu0 0.0
    %1455 = vmatprep.subr.mxu0 0.0
    %1456 = vmatpush1.xpose.msra.mxu0 0.0
    %1457 = vmatprep.subr.mxu0 0.0
    %1458 = vmatpush1.xpose.msra.mxu0 0.0
    %1459 = vmatprep.subr.mxu0 0.0
    %1460 = vmatpush1.xpose.msra.mxu0 0.0
    %1461 = vmatprep.mubr.f32.mxu0 %v560
    %1462 = vmatmul.mubr.f32.gmra.mrb[0].mxu0 %v558
    %v1463 = vpop.f32.mrb[0].mxu0
    %v1464 = vadd.f32 %v1394, %v1463
    %v1465 = vpop.f32.mrb[0].mxu0
    %1466 = vdwg.mxu0
    %1467 = vmatprep.subr.mxu0 %v85
    %1468 = vmatpush1.xpose.msra.mxu0 %v84
    %1469 = vmatprep.subr.mxu0 %v117
    %1470 = vmatpush1.xpose.msra.mxu0 %v116
    %1471 = vmatprep.subr.mxu0 %v149
    %1472 = vmatpush1.xpose.msra.mxu0 %v148
    %1473 = vmatprep.subr.mxu0 %v181
    %1474 = vmatpush1.xpose.msra.mxu0 %v180
    %1475 = vmatprep.subr.mxu0 %v213
    %1476 = vmatpush1.xpose.msra.mxu0 %v212
    %1477 = vmatprep.subr.mxu0 %v245
    %1478 = vmatpush1.xpose.msra.mxu0 %v244
    %1479 = vmatprep.subr.mxu0 %v277
    %1480 = vmatpush1.xpose.msra.mxu0 %v276
    %1481 = vmatprep.subr.mxu0 %v309
    %1482 = vmatpush1.xpose.msra.mxu0 %v308
    %1483 = vmatprep.subr.mxu0 %v341
    %1484 = vmatpush1.xpose.msra.mxu0 %v340
    %1485 = vmatprep.subr.mxu0 %v373
    %1486 = vmatpush1.xpose.msra.mxu0 %v372
    %1487 = vmatprep.subr.mxu0 %v405
    %1488 = vmatpush1.xpose.msra.mxu0 %v404
    %1489 = vmatprep.subr.mxu0 %v437
    %1490 = vmatpush1.xpose.msra.mxu0 %v436
    %1491 = vmatprep.subr.mxu0 0.0
    %1492 = vmatpush1.xpose.msra.mxu0 0.0
    %1493 = vmatprep.subr.mxu0 0.0
    %1494 = vmatpush1.xpose.msra.mxu0 0.0
    %1495 = vmatprep.subr.mxu0 0.0
    %1496 = vmatpush1.xpose.msra.mxu0 0.0
    %1497 = vmatprep.subr.mxu0 0.0
    %1498 = vmatpush1.xpose.msra.mxu0 0.0
    %1499 = vmatprep.subr.mxu0 0.0
    %1500 = vmatpush1.xpose.msra.mxu0 0.0
    %1501 = vmatprep.subr.mxu0 0.0
    %1502 = vmatpush1.xpose.msra.mxu0 0.0
    %1503 = vmatprep.subr.mxu0 0.0
    %1504 = vmatpush1.xpose.msra.mxu0 0.0
    %1505 = vmatprep.subr.mxu0 0.0
    %1506 = vmatpush1.xpose.msra.mxu0 0.0
    %1507 = vmatprep.subr.mxu0 0.0
    %1508 = vmatpush1.xpose.msra.mxu0 0.0
    %1509 = vmatprep.subr.mxu0 0.0
    %1510 = vmatpush1.xpose.msra.mxu0 0.0
    %1511 = vmatprep.subr.mxu0 0.0
    %1512 = vmatpush1.xpose.msra.mxu0 0.0
    %1513 = vmatprep.subr.mxu0 0.0
    %1514 = vmatpush1.xpose.msra.mxu0 0.0
    %1515 = vmatprep.subr.mxu0 0.0
    %1516 = vmatpush1.xpose.msra.mxu0 0.0
    %1517 = vmatprep.subr.mxu0 0.0
    %1518 = vmatpush1.xpose.msra.mxu0 0.0
    %1519 = vmatprep.subr.mxu0 0.0
    %1520 = vmatpush1.xpose.msra.mxu0 0.0
    %1521 = vmatprep.subr.mxu0 0.0
    %1522 = vmatpush1.xpose.msra.mxu0 0.0
    %1523 = vmatprep.subr.mxu0 0.0
    %1524 = vmatpush1.xpose.msra.mxu0 0.0
    %1525 = vmatprep.subr.mxu0 0.0
    %1526 = vmatpush1.xpose.msra.mxu0 0.0
    %1527 = vmatprep.subr.mxu0 0.0
    %1528 = vmatpush1.xpose.msra.mxu0 0.0
    %1529 = vmatprep.subr.mxu0 0.0
    %1530 = vmatpush1.xpose.msra.mxu0 0.0
    %1531 = vmatprep.mubr.f32.mxu0 %v576
    %1532 = vmatmul.mubr.f32.gmra.mrb[0].mxu0 %v568
    %v1533 = vpop.f32.mrb[0].mxu0
    %v1534 = vadd.f32 %v1464, %v1533
    %v1535 = vpop.f32.mrb[0].mxu0
    %1536 = vdwg.mxu0
    %1537 = vmatprep.subr.mxu0 %v87
    %1538 = vmatpush1.xpose.msra.mxu0 %v86
    %1539 = vmatprep.subr.mxu0 %v119
    %1540 = vmatpush1.xpose.msra.mxu0 %v118
    %1541 = vmatprep.subr.mxu0 %v151
    %1542 = vmatpush1.xpose.msra.mxu0 %v150
    %1543 = vmatprep.subr.mxu0 %v183
    %1544 = vmatpush1.xpose.msra.mxu0 %v182
    %1545 = vmatprep.subr.mxu0 %v215
    %1546 = vmatpush1.xpose.msra.mxu0 %v214
    %1547 = vmatprep.subr.mxu0 %v247
    %1548 = vmatpush1.xpose.msra.mxu0 %v246
    %1549 = vmatprep.subr.mxu0 %v279
    %1550 = vmatpush1.xpose.msra.mxu0 %v278
    %1551 = vmatprep.subr.mxu0 %v311
    %1552 = vmatpush1.xpose.msra.mxu0 %v310
    %1553 = vmatprep.subr.mxu0 %v343
    %1554 = vmatpush1.xpose.msra.mxu0 %v342
    %1555 = vmatprep.subr.mxu0 %v375
    %1556 = vmatpush1.xpose.msra.mxu0 %v374
    %1557 = vmatprep.subr.mxu0 %v407
    %1558 = vmatpush1.xpose.msra.mxu0 %v406
    %1559 = vmatprep.subr.mxu0 %v439
    %1560 = vmatpush1.xpose.msra.mxu0 %v438
    %1561 = vmatprep.subr.mxu0 0.0
    %1562 = vmatpush1.xpose.msra.mxu0 0.0
    %1563 = vmatprep.subr.mxu0 0.0
    %1564 = vmatpush1.xpose.msra.mxu0 0.0
    %1565 = vmatprep.subr.mxu0 0.0
    %1566 = vmatpush1.xpose.msra.mxu0 0.0
    %1567 = vmatprep.subr.mxu0 0.0
    %1568 = vmatpush1.xpose.msra.mxu0 0.0
    %1569 = vmatprep.subr.mxu0 0.0
    %1570 = vmatpush1.xpose.msra.mxu0 0.0
    %1571 = vmatprep.subr.mxu0 0.0
    %1572 = vmatpush1.xpose.msra.mxu0 0.0
    %1573 = vmatprep.subr.mxu0 0.0
    %1574 = vmatpush1.xpose.msra.mxu0 0.0
    %1575 = vmatprep.subr.mxu0 0.0
    %1576 = vmatpush1.xpose.msra.mxu0 0.0
    %1577 = vmatprep.subr.mxu0 0.0
    %1578 = vmatpush1.xpose.msra.mxu0 0.0
    %1579 = vmatprep.subr.mxu0 0.0
    %1580 = vmatpush1.xpose.msra.mxu0 0.0
    %1581 = vmatprep.subr.mxu0 0.0
    %1582 = vmatpush1.xpose.msra.mxu0 0.0
    %1583 = vmatprep.subr.mxu0 0.0
    %1584 = vmatpush1.xpose.msra.mxu0 0.0
    %1585 = vmatprep.subr.mxu0 0.0
    %1586 = vmatpush1.xpose.msra.mxu0 0.0
    %1587 = vmatprep.subr.mxu0 0.0
    %1588 = vmatpush1.xpose.msra.mxu0 0.0
    %1589 = vmatprep.subr.mxu0 0.0
    %1590 = vmatpush1.xpose.msra.mxu0 0.0
    %1591 = vmatprep.subr.mxu0 0.0
    %1592 = vmatpush1.xpose.msra.mxu0 0.0
    %1593 = vmatprep.subr.mxu0 0.0
    %1594 = vmatpush1.xpose.msra.mxu0 0.0
    %1595 = vmatprep.subr.mxu0 0.0
    %1596 = vmatpush1.xpose.msra.mxu0 0.0
    %1597 = vmatprep.subr.mxu0 0.0
    %1598 = vmatpush1.xpose.msra.mxu0 0.0
    %1599 = vmatprep.subr.mxu0 0.0
    %1600 = vmatpush1.xpose.msra.mxu0 0.0
    %1601 = vmatprep.mubr.f32.mxu0 %v577
    %1602 = vmatmul.mubr.f32.gmra.mrb[0].mxu0 %v575
    %v1603 = vpop.f32.mrb[0].mxu0
    %v1604 = vadd.f32 %v1534, %v1603
    %v1605 = vpop.f32.mrb[0].mxu0
    %1606 = vdwg.mxu0
    %1607 = vmatprep.subr.mxu0 %v89
    %1608 = vmatpush1.xpose.msra.mxu0 %v88
    %1609 = vmatprep.subr.mxu0 %v121
    %1610 = vmatpush1.xpose.msra.mxu0 %v120
    %1611 = vmatprep.subr.mxu0 %v153
    %1612 = vmatpush1.xpose.msra.mxu0 %v152
    %1613 = vmatprep.subr.mxu0 %v185
    %1614 = vmatpush1.xpose.msra.mxu0 %v184
    %1615 = vmatprep.subr.mxu0 %v217
    %1616 = vmatpush1.xpose.msra.mxu0 %v216
    %1617 = vmatprep.subr.mxu0 %v249
    %1618 = vmatpush1.xpose.msra.mxu0 %v248
    %1619 = vmatprep.subr.mxu0 %v281
    %1620 = vmatpush1.xpose.msra.mxu0 %v280
    %1621 = vmatprep.subr.mxu0 %v313
    %1622 = vmatpush1.xpose.msra.mxu0 %v312
    %1623 = vmatprep.subr.mxu0 %v345
    %1624 = vmatpush1.xpose.msra.mxu0 %v344
    %1625 = vmatprep.subr.mxu0 %v377
    %1626 = vmatpush1.xpose.msra.mxu0 %v376
    %1627 = vmatprep.subr.mxu0 %v409
    %1628 = vmatpush1.xpose.msra.mxu0 %v408
    %1629 = vmatprep.subr.mxu0 %v441
    %1630 = vmatpush1.xpose.msra.mxu0 %v440
    %1631 = vmatprep.subr.mxu0 0.0
    %1632 = vmatpush1.xpose.msra.mxu0 0.0
    %1633 = vmatprep.subr.mxu0 0.0
    %1634 = vmatpush1.xpose.msra.mxu0 0.0
    %1635 = vmatprep.subr.mxu0 0.0
    %1636 = vmatpush1.xpose.msra.mxu0 0.0
    %1637 = vmatprep.subr.mxu0 0.0
    %1638 = vmatpush1.xpose.msra.mxu0 0.0
    %1639 = vmatprep.subr.mxu0 0.0
    %1640 = vmatpush1.xpose.msra.mxu0 0.0
    %1641 = vmatprep.subr.mxu0 0.0
    %1642 = vmatpush1.xpose.msra.mxu0 0.0
    %1643 = vmatprep.subr.mxu0 0.0
    %1644 = vmatpush1.xpose.msra.mxu0 0.0
    %1645 = vmatprep.subr.mxu0 0.0
    %1646 = vmatpush1.xpose.msra.mxu0 0.0
    %1647 = vmatprep.subr.mxu0 0.0
    %1648 = vmatpush1.xpose.msra.mxu0 0.0
    %1649 = vmatprep.subr.mxu0 0.0
    %1650 = vmatpush1.xpose.msra.mxu0 0.0
    %1651 = vmatprep.subr.mxu0 0.0
    %1652 = vmatpush1.xpose.msra.mxu0 0.0
    %1653 = vmatprep.subr.mxu0 0.0
    %1654 = vmatpush1.xpose.msra.mxu0 0.0
    %1655 = vmatprep.subr.mxu0 0.0
    %1656 = vmatpush1.xpose.msra.mxu0 0.0
    %1657 = vmatprep.subr.mxu0 0.0
    %1658 = vmatpush1.xpose.msra.mxu0 0.0
    %1659 = vmatprep.subr.mxu0 0.0
    %1660 = vmatpush1.xpose.msra.mxu0 0.0
    %1661 = vmatprep.subr.mxu0 0.0
    %1662 = vmatpush1.xpose.msra.mxu0 0.0
    %1663 = vmatprep.subr.mxu0 0.0
    %1664 = vmatpush1.xpose.msra.mxu0 0.0
    %1665 = vmatprep.subr.mxu0 0.0
    %1666 = vmatpush1.xpose.msra.mxu0 0.0
    %1667 = vmatprep.subr.mxu0 0.0
    %1668 = vmatpush1.xpose.msra.mxu0 0.0
    %1669 = vmatprep.subr.mxu0 0.0
    %1670 = vmatpush1.xpose.msra.mxu0 0.0
    %1671 = vmatprep.mubr.f32.mxu0 %v593
    %1672 = vmatmul.mubr.f32.gmra.mrb[0].mxu0 %v585
    %v1673 = vpop.f32.mrb[0].mxu0
    %v1674 = vadd.f32 %v1604, %v1673
    %v1675 = vpop.f32.mrb[0].mxu0
    %1676 = vdwg.mxu0
    %1677 = vmatprep.subr.mxu0 %v91
    %1678 = vmatpush1.xpose.msra.mxu0 %v90
    %1679 = vmatprep.subr.mxu0 %v123
    %1680 = vmatpush1.xpose.msra.mxu0 %v122
    %1681 = vmatprep.subr.mxu0 %v155
    %1682 = vmatpush1.xpose.msra.mxu0 %v154
    %1683 = vmatprep.subr.mxu0 %v187
    %1684 = vmatpush1.xpose.msra.mxu0 %v186
    %1685 = vmatprep.subr.mxu0 %v219
    %1686 = vmatpush1.xpose.msra.mxu0 %v218
    %1687 = vmatprep.subr.mxu0 %v251
    %1688 = vmatpush1.xpose.msra.mxu0 %v250
    %1689 = vmatprep.subr.mxu0 %v283
    %1690 = vmatpush1.xpose.msra.mxu0 %v282
    %1691 = vmatprep.subr.mxu0 %v315
    %1692 = vmatpush1.xpose.msra.mxu0 %v314
    %1693 = vmatprep.subr.mxu0 %v347
    %1694 = vmatpush1.xpose.msra.mxu0 %v346
    %1695 = vmatprep.subr.mxu0 %v379
    %1696 = vmatpush1.xpose.msra.mxu0 %v378
    %1697 = vmatprep.subr.mxu0 %v411
    %1698 = vmatpush1.xpose.msra.mxu0 %v410
    %1699 = vmatprep.subr.mxu0 %v443
    %1700 = vmatpush1.xpose.msra.mxu0 %v442
    %1701 = vmatprep.subr.mxu0 0.0
    %1702 = vmatpush1.xpose.msra.mxu0 0.0
    %1703 = vmatprep.subr.mxu0 0.0
    %1704 = vmatpush1.xpose.msra.mxu0 0.0
    %1705 = vmatprep.subr.mxu0 0.0
    %1706 = vmatpush1.xpose.msra.mxu0 0.0
    %1707 = vmatprep.subr.mxu0 0.0
    %1708 = vmatpush1.xpose.msra.mxu0 0.0
    %1709 = vmatprep.subr.mxu0 0.0
    %1710 = vmatpush1.xpose.msra.mxu0 0.0
    %1711 = vmatprep.subr.mxu0 0.0
    %1712 = vmatpush1.xpose.msra.mxu0 0.0
    %1713 = vmatprep.subr.mxu0 0.0
    %1714 = vmatpush1.xpose.msra.mxu0 0.0
    %1715 = vmatprep.subr.mxu0 0.0
    %1716 = vmatpush1.xpose.msra.mxu0 0.0
    %1717 = vmatprep.subr.mxu0 0.0
    %1718 = vmatpush1.xpose.msra.mxu0 0.0
    %1719 = vmatprep.subr.mxu0 0.0
    %1720 = vmatpush1.xpose.msra.mxu0 0.0
    %1721 = vmatprep.subr.mxu0 0.0
    %1722 = vmatpush1.xpose.msra.mxu0 0.0
    %1723 = vmatprep.subr.mxu0 0.0
    %1724 = vmatpush1.xpose.msra.mxu0 0.0
    %1725 = vmatprep.subr.mxu0 0.0
    %1726 = vmatpush1.xpose.msra.mxu0 0.0
    %1727 = vmatprep.subr.mxu0 0.0
    %1728 = vmatpush1.xpose.msra.mxu0 0.0
    %1729 = vmatprep.subr.mxu0 0.0
    %1730 = vmatpush1.xpose.msra.mxu0 0.0
    %1731 = vmatprep.subr.mxu0 0.0
    %1732 = vmatpush1.xpose.msra.mxu0 0.0
    %1733 = vmatprep.subr.mxu0 0.0
    %1734 = vmatpush1.xpose.msra.mxu0 0.0
    %1735 = vmatprep.subr.mxu0 0.0
    %1736 = vmatpush1.xpose.msra.mxu0 0.0
    %1737 = vmatprep.subr.mxu0 0.0
    %1738 = vmatpush1.xpose.msra.mxu0 0.0
    %1739 = vmatprep.subr.mxu0 0.0
    %1740 = vmatpush1.xpose.msra.mxu0 0.0
    %1741 = vmatprep.mubr.f32.mxu0 %v594
    %1742 = vmatmul.mubr.f32.gmra.mrb[0].mxu0 %v592
    %v1743 = vpop.f32.mrb[0].mxu0
    %v1744 = vadd.f32 %v1674, %v1743
    %v1745 = vpop.f32.mrb[0].mxu0
    %1746 = vdwg.mxu0
    %vm1747 = vcmask 779264
    %1748 = vst.msk [vmem:[#allocation8] sm:$0x3] %vm1747, %v1744
    // Predicated region
    $region26: #{tpu_custom_call.1} parent=1 // pred_check
      _
    $region27: #{tpu_custom_call.1} parent=1 // pred_check_branch
      %1750 = sbr.rel (0) target = $region29
    $region28: #{tpu_custom_call.1} parent=1 // pred_region
      %s1752 = ssub.s32 32, 32
      %1753 = vsyncadd [#allocation4], %s1752
      %s1755 = sshll.u32 [#allocation8], 4
      %s1756 = int_to_ptr.vmem [resolvable:$true] %s1755
      %1758 = dma.vmem_to_hbm [thread:$0]  %s1756, 32, %s3, [#allocation4]
    $region29: #{tpu_custom_call.1} parent=1 // pred_fallthru
      _
    // Predicated region
    $region30: #{tpu_custom_call.1} parent=1 // pred_check
      _
    $region31: #{tpu_custom_call.1} parent=1 // pred_check_branch
      %1760 = sbr.rel (0) target = $region33
    $region32: #{tpu_custom_call.1} parent=1 // pred_region
      %1761 = dma.done [#allocation4], 32
    $region33: #{tpu_custom_call.1} parent=1 // pred_fallthru
      _
    %1762 = vsyncpa [#allocation3], 1
    %1763 = vsyncpa [#allocation6], 1
    %1764 = vsyncpa [#allocation4], 1

</llo_original>
